<compile_context>
chip_gen: v7x
topology: tpu7x:2x2x1
jax: 0.10.0
libtpu: 0.0.40
codegen_flags: <defaults>
</compile_context>

<pallas_src>
import functools
import math

import jax
import jax.numpy as jnp
from jax import lax  # noqa: F401  (kept for clarity; einsum lowers to dot_general)
from jax.experimental import pallas as pl
from jax.experimental.pallas import tpu as pltpu


def self_attention_kernel(x_ref, wqkv_ref, wo_ref, o_ref, *,
                          batch_per_block, seq, num_head, d_k, d_v, use_bf16):
    # x_ref: (Bt*S, d)   wqkv_ref: (d, H*(2*d_k + d_v))   wo_ref: (H*d_v, d)
    # o_ref: (Bt*S, d)
    Bt = batch_per_block
    S = seq
    hq = num_head * d_k
    W = 2 * hq + num_head * d_v

    x = x_ref[...]                          # (Bt*S, d)   f32 or bf16
    wqkv = wqkv_ref[...]                    # (d, W)      same dtype as x
    wo = wo_ref[...]                        # (H*d_v, d)  same dtype as x

    # Fused Q/K/V projection: ONE MXU matmul over the whole batch-tile row
    # slab (M = Bt*S).  1/sqrt(d_k) is already folded into the W_q columns.
    qkv = jnp.dot(x, wqkv, preferred_element_type=jnp.float32)      # (Bt*S, W) f32
    qkv = qkv.reshape(Bt, S, W)                                      # tile-aligned split

    mm_dtype = jnp.bfloat16 if use_bf16 else jnp.float32

    head_cols = []
    for h in range(num_head):               # static unroll; H is small
        # Narrow lane slices (width d_k / d_v) -- cheap at this H; for much
        # larger H, switch to one batched dot_general over an (H, S, d_k) view.
        q_h = qkv[:, :, h * d_k:(h + 1) * d_k]                       # (Bt, S, d_k)
        k_h = qkv[:, :, hq + h * d_k: hq + (h + 1) * d_k]            # (Bt, S, d_k)
        v_h = qkv[:, :, 2 * hq + h * d_v: 2 * hq + (h + 1) * d_v]    # (Bt, S, d_v)

        # Scores (Bt, Sq, Sk); K-transpose folded into the contraction.
        s = jnp.einsum('bqc,bkc->bqk', q_h, k_h,
                       preferred_element_type=jnp.float32)

        # Module quirk: softmax over dim=1 of (B, Sq, Sk) == the QUERY axis.
        # Softmax math stays f32 on all chips.
        m = jnp.max(s, axis=1, keepdims=True)
        e = jnp.exp(s - m)
        denom = jnp.sum(e, axis=1, keepdims=True)
        if use_bf16:
            # EUP approx reciprocal frees VALU slots (fast path only; the
            # exact-division f32 path keeps tight agreement with the module).
            a = e * pl.reciprocal(denom, approx=True)
        else:
            a = e / denom

        head_cols.append(
            jnp.einsum('bqk,bkd->bqd',
                       a.astype(mm_dtype), v_h.astype(mm_dtype),
                       preferred_element_type=jnp.float32))          # (Bt, S, d_v)

    # concat(heads, dim=2) -> (Bt, S, H*d_v) -> (Bt*S, H*d_v), then ONE deep
    # output-projection matmul (contraction depth H*d_v) instead of H shallow
    # matmuls accumulated with VPU adds.
    heads = jnp.concatenate(head_cols, axis=2).reshape(Bt * S, num_head * d_v)
    out = jnp.dot(heads.astype(mm_dtype), wo,
                  preferred_element_type=jnp.float32)                # (Bt*S, d) f32

    o_ref[...] = out.astype(o_ref.dtype)


def _default_batch_grid(batch):
    """Pick the number of grid steps over the batch.

    v7x has 2 TensorCores per chip: splitting the batch over 2 'parallel'
    grid steps lets Mosaic shard them across both cores.  v5e/v6e have a
    single TensorCore, so one big step (all of B folded into the matmul M
    dimension) maximizes MXU fill and avoids per-step (~600 cycle) overhead.
    """
    try:
        kind = jax.devices()[0].device_kind.lower()
    except Exception:
        kind = ""
    if ("v7" in kind or "tpu7" in kind) and batch % 2 == 0:
        return 2
    return 1


def qanet_self_attention(x, w_qs, w_ks, w_vs, w_o, *, batch_grid=None,
                         use_bf16=False):
    """x: (B, S, d); w_qs/w_ks: H x (d, d_k); w_vs: H x (d, d_v); w_o: (H*d_v, d)."""
    B, S, d = x.shape
    num_head = len(w_qs)
    d_k = w_qs[0].shape[1]
    d_v = w_vs[0].shape[1]
    assert w_o.shape == (num_head * d_v, d)

    if batch_grid is None:
        batch_grid = _default_batch_grid(B)
    # Fall back to a single step if the split would violate divisibility or
    # the (8, 128)-friendly sublane multiple on the row-slab block.
    if batch_grid > 1 and (B % batch_grid != 0 or ((B // batch_grid) * S) % 8 != 0):
        batch_grid = 1
    Bt = B // batch_grid

    scale = 1.0 / math.sqrt(d_k)
    # Fuse per-head projection weights along the output (lane) axis and fold
    # the 1/sqrt(d_k) score scale into W_q (zero in-kernel cost).
    w_qkv = jnp.concatenate([w * scale for w in w_qs] + list(w_ks) + list(w_vs),
                            axis=1)                                  # (d, H*(2dk+dv))

    mm_dtype = jnp.bfloat16 if use_bf16 else x.dtype
    # Fold batch into the matmul M dimension / lane-dense 2D output slab.
    x2 = x.reshape(B * S, d).astype(mm_dtype)
    w_qkv_c = w_qkv.astype(mm_dtype)
    w_o_c = w_o.astype(mm_dtype)

    kernel = functools.partial(self_attention_kernel,
                               batch_per_block=Bt, seq=S, num_head=num_head,
                               d_k=d_k, d_v=d_v, use_bf16=use_bf16)

    W = w_qkv.shape[1]
    flops = (2 * B * S * d * W                       # fused QKV projection
             + 2 * B * num_head * S * S * d_k        # q @ k^T
             + 2 * B * num_head * S * S * d_v        # attn @ v
             + 2 * B * S * (num_head * d_v) * d)     # output projection
    transcendentals = B * num_head * S * S           # exp in softmax
    out_bytes = B * S * d * jnp.dtype(x.dtype).itemsize
    bytes_accessed = int(x2.size * x2.dtype.itemsize
                         + w_qkv_c.size * w_qkv_c.dtype.itemsize
                         + w_o_c.size * w_o_c.dtype.itemsize
                         + out_bytes)

    out2 = pl.pallas_call(
        kernel,
        out_shape=jax.ShapeDtypeStruct((B * S, d), x.dtype),
        grid_spec=pltpu.PrefetchScalarGridSpec(
            num_scalar_prefetch=0,
            grid=(batch_grid,),
            in_specs=[
                # Row slab of Bt*S rows per grid step.
                pl.BlockSpec((Bt * S, d), lambda i: (i, 0)),
                # Weights: constant block index -> DMA'd once, VMEM-resident
                # for the whole grid.
                pl.BlockSpec(w_qkv_c.shape, lambda i: (0, 0)),
                pl.BlockSpec(w_o_c.shape, lambda i: (0, 0)),
            ],
            out_specs=pl.BlockSpec((Bt * S, d), lambda i: (i, 0)),
        ),
        compiler_params=pltpu.CompilerParams(
            # Batch tiles are independent: with batch_grid=2 on v7x this
            # shards them across the two TensorCores; harmless on v5e/v6e.
            dimension_semantics=("parallel",),
        ),
        cost_estimate=pl.CostEstimate(flops=flops,
                                      transcendentals=transcendentals,
                                      bytes_accessed=bytes_accessed),
    )(x2, w_qkv_c, w_o_c)

    return out2.reshape(B, S, d)


if __name__ == "__main__":
    # Small config consistent with the module:
    #   connector_dim d = 32, num_head = 4 (d_k = d_v = 8), seq S = 8, batch B = 2.
    B, S, d, num_head = 2, 8, 32, 4
    d_k = d_v = d // num_head

    key = jax.random.PRNGKey(0)
    keys = jax.random.split(key, 3 * num_head + 2)
    k_x, k_o = keys[0], keys[1]
    head_keys = keys[2:]

    x = jax.random.normal(k_x, (B, S, d), dtype=jnp.float32)

    # xavier_uniform_ on (d, d_k): bound = sqrt(6 / (d + d_k))
    xb = math.sqrt(6.0 / (d + d_k))
    w_qs = [jax.random.uniform(head_keys[i], (d, d_k),
                               minval=-xb, maxval=xb, dtype=jnp.float32)
            for i in range(num_head)]
    w_ks = [jax.random.uniform(head_keys[num_head + i], (d, d_k),
                               minval=-xb, maxval=xb, dtype=jnp.float32)
            for i in range(num_head)]
    w_vs = [jax.random.uniform(head_keys[2 * num_head + i], (d, d_v),
                               minval=-xb, maxval=xb, dtype=jnp.float32)
            for i in range(num_head)]
    # kaiming_uniform_ on (H*d_v, d): bound = sqrt(6 / fan_in), fan_in = d
    kb = math.sqrt(6.0 / d)
    w_o = jax.random.uniform(k_o, (num_head * d_v, d),
                             minval=-kb, maxval=kb, dtype=jnp.float32)

    # Pure-JAX reference replicating the PyTorch forward exactly
    # (including softmax over dim=1, the query axis).
    scale = 1.0 / math.sqrt(d_k)
    heads = []
    for h in range(num_head):
        q = x @ w_qs[h]
        k = x @ w_ks[h]
        v = x @ w_vs[h]
        s = jnp.einsum('bqc,bkc->bqk', q, k) * scale
        a = jax.nn.softmax(s, axis=1)        # dim=1 as in the torch module
        heads.append(jnp.einsum('bqk,bkd->bqd', a, v))
    ref = jnp.concatenate(heads, axis=2) @ w_o

    # Default (f32) path: matches the fp32 module tightly.
    out = qanet_self_attention(x, w_qs, w_ks, w_vs, w_o)
    jax.block_until_ready(out)
    assert out.shape == (B, S, d)
    assert jnp.allclose(out, ref, atol=1e-4, rtol=1e-4)

    # bf16 MXU-operand fast path (v6e/v7x feedback); softmax stays f32,
    # accumulation stays f32 -> validated at reduced-precision tolerance.
    out_bf16 = qanet_self_attention(x, w_qs, w_ks, w_vs, w_o, use_bf16=True)
    jax.block_until_ready(out_bf16)
    assert out_bf16.shape == (B, S, d)
    assert jnp.allclose(out_bf16, ref, atol=1e-1, rtol=1e-1)

    # TODO(synk): the module's `del`/`gc.collect()` are host-side memory hints
    # with no Pallas equivalent (VMEM buffers are scoped automatically).

    print("KERNEL_OK")
</pallas_src>

<mosaic_0001>
module attributes {stable_mosaic.version = 11 : i64} {
  func.func @self_attention_kernel(%arg0: i32, %arg1: memref<16x32xf32, #tpu.memory_space<vmem>>, %arg2: memref<32x96xf32, #tpu.memory_space<vmem>>, %arg3: memref<32x32xf32, #tpu.memory_space<vmem>>, %arg4: memref<16x32xf32, #tpu.memory_space<vmem>>) attributes {dimension_semantics = [#tpu.dimension_semantics<parallel>], iteration_bounds = array<i64: 1>, scalar_prefetch = 0 : i64, scratch_operands = 0 : i64, tpu.core_type = #tpu.core_type<tc>, window_params = [{transform_indices = @transform_0, window_bounds = array<i64: 16, 32>}, {pipeline_mode = #tpu.pipeline_mode<synchronous>, transform_indices = @transform_1, window_bounds = array<i64: 32, 96>}, {pipeline_mode = #tpu.pipeline_mode<synchronous>, transform_indices = @transform_2, window_bounds = array<i64: 32, 32>}, {transform_indices = @transform_3, window_bounds = array<i64: 16, 32>}]} {
    %c0 = arith.constant 0 : index
    %c0_0 = arith.constant 0 : index
    %0 = vector.load %arg1[%c0, %c0_0] : memref<16x32xf32, #tpu.memory_space<vmem>>, vector<16x32xf32>
    %c0_1 = arith.constant 0 : index
    %c0_2 = arith.constant 0 : index
    %1 = vector.load %arg2[%c0_1, %c0_2] : memref<32x96xf32, #tpu.memory_space<vmem>>, vector<32x96xf32>
    %c0_3 = arith.constant 0 : index
    %c0_4 = arith.constant 0 : index
    %2 = vector.load %arg3[%c0_3, %c0_4] : memref<32x32xf32, #tpu.memory_space<vmem>>, vector<32x32xf32>
    %cst = arith.constant dense<0.000000e+00> : vector<16x96xf32>
    %3 = tpu.matmul %0, %1, %cst {dimension_numbers = #tpu.dot_dimension_numbers<[1], [0], [0], [1], [0, 0, 1, 1], [], []>} : vector<16x32xf32>, vector<32x96xf32>, vector<16x96xf32> -> vector<16x96xf32>
    %4 = vector.shape_cast %3 : vector<16x96xf32> to vector<2x8x96xf32>
    %5 = vector.extract_strided_slice %4 {offsets = [0, 0, 0], sizes = [2, 8, 8], strides = [1, 1, 1]} : vector<2x8x96xf32> to vector<2x8x8xf32>
    %6 = vector.extract_strided_slice %4 {offsets = [0, 0, 32], sizes = [2, 8, 8], strides = [1, 1, 1]} : vector<2x8x96xf32> to vector<2x8x8xf32>
    %7 = vector.extract_strided_slice %4 {offsets = [0, 0, 64], sizes = [2, 8, 8], strides = [1, 1, 1]} : vector<2x8x96xf32> to vector<2x8x8xf32>
    "tpu.trace_start"() <{level = 10 : i32, message = "bqc,bkc->bqk"}> : () -> ()
    %cst_5 = arith.constant dense<0.000000e+00> : vector<2x8x8xf32>
    %8 = tpu.matmul %5, %6, %cst_5 {dimension_numbers = #tpu.dot_dimension_numbers<[2], [2], [1], [1], [0, 0, 0, 1, 1, 1], [0], [0]>} : vector<2x8x8xf32>, vector<2x8x8xf32>, vector<2x8x8xf32> -> vector<2x8x8xf32>
    "tpu.trace_stop"() : () -> ()
    %cst_6 = arith.constant dense<0xFF800000> : vector<2x8xf32>
    %9 = vector.multi_reduction <maximumf>, %8, %cst_6 [1] : vector<2x8x8xf32> to vector<2x8xf32>
    %10 = vector.shape_cast %9 : vector<2x8xf32> to vector<2x1x8xf32>
    %11 = vector.broadcast %10 : vector<2x1x8xf32> to vector<2x8x8xf32>
    %12 = arith.subf %8, %11 : vector<2x8x8xf32>
    %13 = math.exp %12 : vector<2x8x8xf32>
    %cst_7 = arith.constant dense<0.000000e+00> : vector<2x8xf32>
    %14 = vector.multi_reduction <add>, %13, %cst_7 [1] : vector<2x8x8xf32> to vector<2x8xf32>
    %15 = vector.shape_cast %14 : vector<2x8xf32> to vector<2x1x8xf32>
    %16 = vector.broadcast %15 : vector<2x1x8xf32> to vector<2x8x8xf32>
    %17 = arith.divf %13, %16 : vector<2x8x8xf32>
    "tpu.trace_start"() <{level = 10 : i32, message = "bqk,bkd->bqd"}> : () -> ()
    %cst_8 = arith.constant dense<0.000000e+00> : vector<2x8x8xf32>
    %18 = tpu.matmul %17, %7, %cst_8 {dimension_numbers = #tpu.dot_dimension_numbers<[2], [1], [1], [2], [0, 0, 0, 1, 1, 2], [0], [0]>} : vector<2x8x8xf32>, vector<2x8x8xf32>, vector<2x8x8xf32> -> vector<2x8x8xf32>
    "tpu.trace_stop"() : () -> ()
    %19 = vector.extract_strided_slice %4 {offsets = [0, 0, 8], sizes = [2, 8, 8], strides = [1, 1, 1]} : vector<2x8x96xf32> to vector<2x8x8xf32>
    %20 = vector.extract_strided_slice %4 {offsets = [0, 0, 40], sizes = [2, 8, 8], strides = [1, 1, 1]} : vector<2x8x96xf32> to vector<2x8x8xf32>
    %21 = vector.extract_strided_slice %4 {offsets = [0, 0, 72], sizes = [2, 8, 8], strides = [1, 1, 1]} : vector<2x8x96xf32> to vector<2x8x8xf32>
    "tpu.trace_start"() <{level = 10 : i32, message = "bqc,bkc->bqk"}> : () -> ()
    %cst_9 = arith.constant dense<0.000000e+00> : vector<2x8x8xf32>
    %22 = tpu.matmul %19, %20, %cst_9 {dimension_numbers = #tpu.dot_dimension_numbers<[2], [2], [1], [1], [0, 0, 0, 1, 1, 1], [0], [0]>} : vector<2x8x8xf32>, vector<2x8x8xf32>, vector<2x8x8xf32> -> vector<2x8x8xf32>
    "tpu.trace_stop"() : () -> ()
    %cst_10 = arith.constant dense<0xFF800000> : vector<2x8xf32>
    %23 = vector.multi_reduction <maximumf>, %22, %cst_10 [1] : vector<2x8x8xf32> to vector<2x8xf32>
    %24 = vector.shape_cast %23 : vector<2x8xf32> to vector<2x1x8xf32>
    %25 = vector.broadcast %24 : vector<2x1x8xf32> to vector<2x8x8xf32>
    %26 = arith.subf %22, %25 : vector<2x8x8xf32>
    %27 = math.exp %26 : vector<2x8x8xf32>
    %cst_11 = arith.constant dense<0.000000e+00> : vector<2x8xf32>
    %28 = vector.multi_reduction <add>, %27, %cst_11 [1] : vector<2x8x8xf32> to vector<2x8xf32>
    %29 = vector.shape_cast %28 : vector<2x8xf32> to vector<2x1x8xf32>
    %30 = vector.broadcast %29 : vector<2x1x8xf32> to vector<2x8x8xf32>
    %31 = arith.divf %27, %30 : vector<2x8x8xf32>
    "tpu.trace_start"() <{level = 10 : i32, message = "bqk,bkd->bqd"}> : () -> ()
    %cst_12 = arith.constant dense<0.000000e+00> : vector<2x8x8xf32>
    %32 = tpu.matmul %31, %21, %cst_12 {dimension_numbers = #tpu.dot_dimension_numbers<[2], [1], [1], [2], [0, 0, 0, 1, 1, 2], [0], [0]>} : vector<2x8x8xf32>, vector<2x8x8xf32>, vector<2x8x8xf32> -> vector<2x8x8xf32>
    "tpu.trace_stop"() : () -> ()
    %33 = vector.extract_strided_slice %4 {offsets = [0, 0, 16], sizes = [2, 8, 8], strides = [1, 1, 1]} : vector<2x8x96xf32> to vector<2x8x8xf32>
    %34 = vector.extract_strided_slice %4 {offsets = [0, 0, 48], sizes = [2, 8, 8], strides = [1, 1, 1]} : vector<2x8x96xf32> to vector<2x8x8xf32>
    %35 = vector.extract_strided_slice %4 {offsets = [0, 0, 80], sizes = [2, 8, 8], strides = [1, 1, 1]} : vector<2x8x96xf32> to vector<2x8x8xf32>
    "tpu.trace_start"() <{level = 10 : i32, message = "bqc,bkc->bqk"}> : () -> ()
    %cst_13 = arith.constant dense<0.000000e+00> : vector<2x8x8xf32>
    %36 = tpu.matmul %33, %34, %cst_13 {dimension_numbers = #tpu.dot_dimension_numbers<[2], [2], [1], [1], [0, 0, 0, 1, 1, 1], [0], [0]>} : vector<2x8x8xf32>, vector<2x8x8xf32>, vector<2x8x8xf32> -> vector<2x8x8xf32>
    "tpu.trace_stop"() : () -> ()
    %cst_14 = arith.constant dense<0xFF800000> : vector<2x8xf32>
    %37 = vector.multi_reduction <maximumf>, %36, %cst_14 [1] : vector<2x8x8xf32> to vector<2x8xf32>
    %38 = vector.shape_cast %37 : vector<2x8xf32> to vector<2x1x8xf32>
    %39 = vector.broadcast %38 : vector<2x1x8xf32> to vector<2x8x8xf32>
    %40 = arith.subf %36, %39 : vector<2x8x8xf32>
    %41 = math.exp %40 : vector<2x8x8xf32>
    %cst_15 = arith.constant dense<0.000000e+00> : vector<2x8xf32>
    %42 = vector.multi_reduction <add>, %41, %cst_15 [1] : vector<2x8x8xf32> to vector<2x8xf32>
    %43 = vector.shape_cast %42 : vector<2x8xf32> to vector<2x1x8xf32>
    %44 = vector.broadcast %43 : vector<2x1x8xf32> to vector<2x8x8xf32>
    %45 = arith.divf %41, %44 : vector<2x8x8xf32>
    "tpu.trace_start"() <{level = 10 : i32, message = "bqk,bkd->bqd"}> : () -> ()
    %cst_16 = arith.constant dense<0.000000e+00> : vector<2x8x8xf32>
    %46 = tpu.matmul %45, %35, %cst_16 {dimension_numbers = #tpu.dot_dimension_numbers<[2], [1], [1], [2], [0, 0, 0, 1, 1, 2], [0], [0]>} : vector<2x8x8xf32>, vector<2x8x8xf32>, vector<2x8x8xf32> -> vector<2x8x8xf32>
    "tpu.trace_stop"() : () -> ()
    %47 = vector.extract_strided_slice %4 {offsets = [0, 0, 24], sizes = [2, 8, 8], strides = [1, 1, 1]} : vector<2x8x96xf32> to vector<2x8x8xf32>
    %48 = vector.extract_strided_slice %4 {offsets = [0, 0, 56], sizes = [2, 8, 8], strides = [1, 1, 1]} : vector<2x8x96xf32> to vector<2x8x8xf32>
    %49 = vector.extract_strided_slice %4 {offsets = [0, 0, 88], sizes = [2, 8, 8], strides = [1, 1, 1]} : vector<2x8x96xf32> to vector<2x8x8xf32>
    "tpu.trace_start"() <{level = 10 : i32, message = "bqc,bkc->bqk"}> : () -> ()
    %cst_17 = arith.constant dense<0.000000e+00> : vector<2x8x8xf32>
    %50 = tpu.matmul %47, %48, %cst_17 {dimension_numbers = #tpu.dot_dimension_numbers<[2], [2], [1], [1], [0, 0, 0, 1, 1, 1], [0], [0]>} : vector<2x8x8xf32>, vector<2x8x8xf32>, vector<2x8x8xf32> -> vector<2x8x8xf32>
    "tpu.trace_stop"() : () -> ()
    %cst_18 = arith.constant dense<0xFF800000> : vector<2x8xf32>
    %51 = vector.multi_reduction <maximumf>, %50, %cst_18 [1] : vector<2x8x8xf32> to vector<2x8xf32>
    %52 = vector.shape_cast %51 : vector<2x8xf32> to vector<2x1x8xf32>
    %53 = vector.broadcast %52 : vector<2x1x8xf32> to vector<2x8x8xf32>
    %54 = arith.subf %50, %53 : vector<2x8x8xf32>
    %55 = math.exp %54 : vector<2x8x8xf32>
    %cst_19 = arith.constant dense<0.000000e+00> : vector<2x8xf32>
    %56 = vector.multi_reduction <add>, %55, %cst_19 [1] : vector<2x8x8xf32> to vector<2x8xf32>
    %57 = vector.shape_cast %56 : vector<2x8xf32> to vector<2x1x8xf32>
    %58 = vector.broadcast %57 : vector<2x1x8xf32> to vector<2x8x8xf32>
    %59 = arith.divf %55, %58 : vector<2x8x8xf32>
    "tpu.trace_start"() <{level = 10 : i32, message = "bqk,bkd->bqd"}> : () -> ()
    %cst_20 = arith.constant dense<0.000000e+00> : vector<2x8x8xf32>
    %60 = tpu.matmul %59, %49, %cst_20 {dimension_numbers = #tpu.dot_dimension_numbers<[2], [1], [1], [2], [0, 0, 0, 1, 1, 2], [0], [0]>} : vector<2x8x8xf32>, vector<2x8x8xf32>, vector<2x8x8xf32> -> vector<2x8x8xf32>
    "tpu.trace_stop"() : () -> ()
    %61 = tpu.concatenate %18, %32, %46, %60 in 2 : vector<2x8x8xf32>, vector<2x8x8xf32>, vector<2x8x8xf32>, vector<2x8x8xf32> -> vector<2x8x32xf32>
    %62 = vector.shape_cast %61 : vector<2x8x32xf32> to vector<16x32xf32>
    %cst_21 = arith.constant dense<0.000000e+00> : vector<16x32xf32>
    %63 = tpu.matmul %62, %2, %cst_21 {dimension_numbers = #tpu.dot_dimension_numbers<[1], [0], [0], [1], [0, 0, 1, 1], [], []>} : vector<16x32xf32>, vector<32x32xf32>, vector<16x32xf32> -> vector<16x32xf32>
    %c0_22 = arith.constant 0 : index
    %c0_23 = arith.constant 0 : index
    %64 = vector.load %arg4[%c0_22, %c0_23] : memref<16x32xf32, #tpu.memory_space<vmem>>, vector<16x32xf32>
    tpu.vector_store %arg4[%c0_22, %c0_23], %63 {strides = array<i32>} : memref<16x32xf32, #tpu.memory_space<vmem>>, vector<16x32xf32>,
    return
  }
  func.func @transform_0(%arg0: i32) -> (i32, i32) {
    %c0_i32 = arith.constant 0 : i32
    %c0_i32_0 = arith.constant 0 : i32
    return %arg0, %c0_i32 : i32, i32
  }
  func.func @transform_1(%arg0: i32) -> (i32, i32) {
    %c0_i32 = arith.constant 0 : i32
    %c0_i32_0 = arith.constant 0 : i32
    %c0_i32_1 = arith.constant 0 : i32
    return %c0_i32, %c0_i32_0 : i32, i32
  }
  func.func @transform_2(%arg0: i32) -> (i32, i32) {
    %c0_i32 = arith.constant 0 : i32
    %c0_i32_0 = arith.constant 0 : i32
    %c0_i32_1 = arith.constant 0 : i32
    return %c0_i32, %c0_i32_0 : i32, i32
  }
  func.func @transform_3(%arg0: i32) -> (i32, i32) {
    %c0_i32 = arith.constant 0 : i32
    %c0_i32_0 = arith.constant 0 : i32
    return %arg0, %c0_i32 : i32, i32
  }
}

</mosaic_0001>

<llo_original>
// kernel: tpu_custom_call.1
$region0: #{tpu_custom_call.1}
  #allocation0 [shape = 'u32[]', space=smem, size = 0x4, offset = 0x4, fixed_abs, tag = 'smem constant byte address 0x4 - core index']
  #allocation1 [shape = 'u32[144,128]{1,0:T(1,128)}', space=vmem, size = 0x12000, scoped, tag = 'internal scratch']
  %s0 = inlined_call_operand.hbm [shape: f32[16,32], index: 0, kind: input, shape index: {}]
  %s1 = inlined_call_operand.hbm [shape: f32[32,96], index: 1, kind: input, shape index: {}]
  %s2 = inlined_call_operand.hbm [shape: f32[32,32], index: 2, kind: input, shape index: {}]
  %s3 = inlined_call_operand.hbm [shape: f32[16,32], index: 3, kind: output, shape index: {}]
  %s4 = sld [smem:[#allocation0]]
  $region34: #{tpu_custom_call.1} parent=0
    _
  %s6 = ssub.s32 1, %s4
  %s7 = scalar_select 0, %s6, %s4
  $region1: #{tpu_custom_call.1} parent=0
    #allocation2 [shape = 'u8[8192]{0}', space=vmem, size = 0x2000, scoped, tag = 'input window, operand 0, single buffered']
    #allocation3 [shape = 's32[1]{0}', space=sflag, size = 0x4, scoped, tag = 'scoped memory for tpu_custom_call.1']
    #allocation4 [shape = 's32[1]{0}', space=sflag, size = 0x4, scoped, tag = 'scoped memory for tpu_custom_call.1']
    #allocation5 [shape = 'u8[16384]{0}', space=vmem, size = 0x4000, scoped, tag = 'input window, operand 1, single buffered']
    #allocation6 [shape = 's32[1]{0}', space=sflag, size = 0x4, scoped, tag = 'scoped memory for tpu_custom_call.1']
    #allocation7 [shape = 'u8[16384]{0}', space=vmem, size = 0x4000, scoped, tag = 'input window, operand 2, single buffered']
    #allocation8 [shape = 'u8[8192]{0}', space=vmem, size = 0x2000, scoped, tag = 'output window, operand 0, single buffered']
    %8 = vsyncpa [#allocation3], 0
    %9 = vsyncpa [#allocation6], 0
    %10 = vsyncpa [#allocation4], 0
    // Predicated region
    $region2: #{tpu_custom_call.1} parent=1 // pred_check
      _
    $region3: #{tpu_custom_call.1} parent=1 // pred_check_branch
      %12 = sbr.rel (0) target = $region5
    $region4: #{tpu_custom_call.1} parent=1 // pred_region
      %s14 = ssub.s32 256, 256
      %15 = vsyncadd [#allocation3], %s14
      %s16 = sshll.u32 [#allocation2], 4
      %s17 = int_to_ptr.vmem [resolvable:$true] %s16
      %22 = dma.hbm_to_vmem [thread:$0]  %s0, 256, %s17, [#allocation3], 128, 128, 8
    $region5: #{tpu_custom_call.1} parent=1 // pred_fallthru
      _
    // Predicated region
    $region6: #{tpu_custom_call.1} parent=1 // pred_check
      _
    $region7: #{tpu_custom_call.1} parent=1 // pred_check_branch
      %24 = sbr.rel (0) target = $region9
    $region8: #{tpu_custom_call.1} parent=1 // pred_region
      %s26 = ssub.s32 512, 512
      %27 = vsyncadd [#allocation6], %s26
      %s28 = sshll.u32 [#allocation5], 4
      %s29 = int_to_ptr.vmem [resolvable:$true] %s28
      %34 = dma.hbm_to_vmem [thread:$0]  %s1, 512, %s29, [#allocation6], 128, 128, 8
    $region9: #{tpu_custom_call.1} parent=1 // pred_fallthru
      _
    // Predicated region
    $region10: #{tpu_custom_call.1} parent=1 // pred_check
      _
    $region11: #{tpu_custom_call.1} parent=1 // pred_check_branch
      %36 = sbr.rel (0) target = $region13
    $region12: #{tpu_custom_call.1} parent=1 // pred_region
      %s38 = ssub.s32 512, 512
      %39 = vsyncadd [#allocation6], %s38
      %s40 = sshll.u32 [#allocation7], 4
      %s41 = int_to_ptr.vmem [resolvable:$true] %s40
      %46 = dma.hbm_to_vmem [thread:$0]  %s2, 512, %s41, [#allocation6], 128, 128, 8
    $region13: #{tpu_custom_call.1} parent=1 // pred_fallthru
      _
    // Predicated region
    $region14: #{tpu_custom_call.1} parent=1 // pred_check
      _
    $region15: #{tpu_custom_call.1} parent=1 // pred_check_branch
      %48 = sbr.rel (0) target = $region17
    $region16: #{tpu_custom_call.1} parent=1 // pred_region
      %49 = dma.done [#allocation3], 256
    $region17: #{tpu_custom_call.1} parent=1 // pred_fallthru
      _
    // Predicated region
    $region18: #{tpu_custom_call.1} parent=1 // pred_check
      _
    $region19: #{tpu_custom_call.1} parent=1 // pred_check_branch
      %51 = sbr.rel (0) target = $region21
    $region20: #{tpu_custom_call.1} parent=1 // pred_region
      %52 = dma.done [#allocation6], 512
    $region21: #{tpu_custom_call.1} parent=1 // pred_fallthru
      _
    // Predicated region
    $region22: #{tpu_custom_call.1} parent=1 // pred_check
      _
    $region23: #{tpu_custom_call.1} parent=1 // pred_check_branch
      %54 = sbr.rel (0) target = $region25
    $region24: #{tpu_custom_call.1} parent=1 // pred_region
      %55 = dma.done [#allocation6], 512
    $region25: #{tpu_custom_call.1} parent=1 // pred_fallthru
      _
    %v56 = vld [vmem:[#allocation2] sm:$0xff]
    %v57 = vld [vmem:[#allocation2 + $0x8] sm:$0xff]
    %v58 = vld [vmem:[#allocation5] sm:$0xff]
    %v59 = vld [vmem:[#allocation5 + $0x8] sm:$0xff]
    %v60 = vld [vmem:[#allocation5 + $0x10] sm:$0xff]
    %v61 = vld [vmem:[#allocation5 + $0x18] sm:$0xff]
    %v62 = vld [vmem:[#allocation7] sm:$0xff]
    %v63 = vld [vmem:[#allocation7 + $0x8] sm:$0xff]
    %v64 = vld [vmem:[#allocation7 + $0x10] sm:$0xff]
    %v65 = vld [vmem:[#allocation7 + $0x18] sm:$0xff]
    %vm66 = vcmask 261120
    %v68 = vsel %vm66, %v56, 0
    %v71 = vsel %vm66, %v57, 0
    %73 = vmatprep.subr.mxu0 0.0
    %74 = vmatpush1.msra.mxu0 %v58
    %75 = vmatprep.subr.mxu0 0.0
    %76 = vmatpush1.msra.mxu0 %v59
    %77 = vmatprep.subr.mxu0 0.0
    %78 = vmatpush1.msra.mxu0 %v60
    %79 = vmatprep.subr.mxu0 0.0
    %80 = vmatpush1.msra.mxu0 %v61
    %81 = vmatprep.subr.mxu0 0.0
    %82 = vmatpush1.msra.mxu0 0.0
    %83 = vmatprep.subr.mxu0 0.0
    %84 = vmatpush1.msra.mxu0 0.0
    %85 = vmatprep.subr.mxu0 0.0
    %86 = vmatpush1.msra.mxu0 0.0
    %87 = vmatprep.subr.mxu0 0.0
    %88 = vmatpush1.msra.mxu0 0.0
    %89 = vmatprep.subr.mxu0 0.0
    %90 = vmatpush1.msra.mxu0 0.0
    %91 = vmatprep.subr.mxu0 0.0
    %92 = vmatpush1.msra.mxu0 0.0
    %93 = vmatprep.subr.mxu0 0.0
    %94 = vmatpush1.msra.mxu0 0.0
    %95 = vmatprep.subr.mxu0 0.0
    %96 = vmatpush1.msra.mxu0 0.0
    %97 = vmatprep.subr.mxu0 0.0
    %98 = vmatpush1.msra.mxu0 0.0
    %99 = vmatprep.subr.mxu0 0.0
    %100 = vmatpush1.msra.mxu0 0.0
    %101 = vmatprep.subr.mxu0 0.0
    %102 = vmatpush1.msra.mxu0 0.0
    %103 = vmatprep.subr.mxu0 0.0
    %104 = vmatpush1.msra.mxu0 0.0
    %105 = vmatprep.subr.mxu0 0.0
    %106 = vmatpush1.msra.mxu0 0.0
    %107 = vmatprep.subr.mxu0 0.0
    %108 = vmatpush1.msra.mxu0 0.0
    %109 = vmatprep.subr.mxu0 0.0
    %110 = vmatpush1.msra.mxu0 0.0
    %111 = vmatprep.subr.mxu0 0.0
    %112 = vmatpush1.msra.mxu0 0.0
    %113 = vmatprep.subr.mxu0 0.0
    %114 = vmatpush1.msra.mxu0 0.0
    %115 = vmatprep.subr.mxu0 0.0
    %116 = vmatpush1.msra.mxu0 0.0
    %117 = vmatprep.subr.mxu0 0.0
    %118 = vmatpush1.msra.mxu0 0.0
    %119 = vmatprep.subr.mxu0 0.0
    %120 = vmatpush1.msra.mxu0 0.0
    %121 = vmatprep.subr.mxu0 0.0
    %122 = vmatpush1.msra.mxu0 0.0
    %123 = vmatprep.subr.mxu0 0.0
    %124 = vmatpush1.msra.mxu0 0.0
    %125 = vmatprep.subr.mxu0 0.0
    %126 = vmatpush1.msra.mxu0 0.0
    %127 = vmatprep.subr.mxu0 0.0
    %128 = vmatpush1.msra.mxu0 0.0
    %129 = vmatprep.subr.mxu0 0.0
    %130 = vmatpush1.msra.mxu0 0.0
    %131 = vmatprep.subr.mxu0 0.0
    %132 = vmatpush1.msra.mxu0 0.0
    %133 = vmatprep.subr.mxu0 0.0
    %134 = vmatpush1.msra.mxu0 0.0
    %135 = vmatprep.subr.mxu0 0.0
    %136 = vmatpush1.msra.mxu0 0.0
    %137 = vmatprep.mubr.f32.mxu0 0.0
    %138 = vmatmul.mubr.f32.gmra.mrb[0].mxu0 %v68
    %v139 = vpop.f32.mrb[0].mxu0
    %v140 = vadd.f32 0.0, %v139
    %v141 = vpop.f32.mrb[0].mxu0
    %142 = vmatprep.mubr.f32.mxu0 0.0
    %143 = vmatmul.mubr.f32.gmra.mrb[0].mxu0 %v71
    %v144 = vpop.f32.mrb[0].mxu0
    %v145 = vadd.f32 0.0, %v144
    %v146 = vpop.f32.mrb[0].mxu0
    %147 = vdwg.mxu0
    %149 = vrot.lane.b32.xlu0 %v140, 96
    %v150 = vpop.permute.xlu0 %149
    %vm151 = vcmask 64512
    %v152 = vsel %vm151, %v140, 0
    %v154 = vsel %vm151, %v150, 0
    %156 = vmatprep.subr.mxu0 0.0
    %157 = vmatpush1.xpose.msra.mxu0 %v154
    %158 = vmatprep.subr.mxu0 0.0
    %159 = vmatpush1.xpose.msra.mxu0 0.0
    %160 = vmatprep.subr.mxu0 0.0
    %161 = vmatpush1.xpose.msra.mxu0 0.0
    %162 = vmatprep.subr.mxu0 0.0
    %163 = vmatpush1.xpose.msra.mxu0 0.0
    %164 = vmatprep.subr.mxu0 0.0
    %165 = vmatpush1.xpose.msra.mxu0 0.0
    %166 = vmatprep.subr.mxu0 0.0
    %167 = vmatpush1.xpose.msra.mxu0 0.0
    %168 = vmatprep.subr.mxu0 0.0
    %169 = vmatpush1.xpose.msra.mxu0 0.0
    %170 = vmatprep.subr.mxu0 0.0
    %171 = vmatpush1.xpose.msra.mxu0 0.0
    %172 = vmatprep.subr.mxu0 0.0
    %173 = vmatpush1.xpose.msra.mxu0 0.0
    %174 = vmatprep.subr.mxu0 0.0
    %175 = vmatpush1.xpose.msra.mxu0 0.0
    %176 = vmatprep.subr.mxu0 0.0
    %177 = vmatpush1.xpose.msra.mxu0 0.0
    %178 = vmatprep.subr.mxu0 0.0
    %179 = vmatpush1.xpose.msra.mxu0 0.0
    %180 = vmatprep.subr.mxu0 0.0
    %181 = vmatpush1.xpose.msra.mxu0 0.0
    %182 = vmatprep.subr.mxu0 0.0
    %183 = vmatpush1.xpose.msra.mxu0 0.0
    %184 = vmatprep.subr.mxu0 0.0
    %185 = vmatpush1.xpose.msra.mxu0 0.0
    %186 = vmatprep.subr.mxu0 0.0
    %187 = vmatpush1.xpose.msra.mxu0 0.0
    %188 = vmatprep.subr.mxu0 0.0
    %189 = vmatpush1.xpose.msra.mxu0 0.0
    %190 = vmatprep.subr.mxu0 0.0
    %191 = vmatpush1.xpose.msra.mxu0 0.0
    %192 = vmatprep.subr.mxu0 0.0
    %193 = vmatpush1.xpose.msra.mxu0 0.0
    %194 = vmatprep.subr.mxu0 0.0
    %195 = vmatpush1.xpose.msra.mxu0 0.0
    %196 = vmatprep.subr.mxu0 0.0
    %197 = vmatpush1.xpose.msra.mxu0 0.0
    %198 = vmatprep.subr.mxu0 0.0
    %199 = vmatpush1.xpose.msra.mxu0 0.0
    %200 = vmatprep.subr.mxu0 0.0
    %201 = vmatpush1.xpose.msra.mxu0 0.0
    %202 = vmatprep.subr.mxu0 0.0
    %203 = vmatpush1.xpose.msra.mxu0 0.0
    %204 = vmatprep.subr.mxu0 0.0
    %205 = vmatpush1.xpose.msra.mxu0 0.0
    %206 = vmatprep.subr.mxu0 0.0
    %207 = vmatpush1.xpose.msra.mxu0 0.0
    %208 = vmatprep.subr.mxu0 0.0
    %209 = vmatpush1.xpose.msra.mxu0 0.0
    %210 = vmatprep.subr.mxu0 0.0
    %211 = vmatpush1.xpose.msra.mxu0 0.0
    %212 = vmatprep.subr.mxu0 0.0
    %213 = vmatpush1.xpose.msra.mxu0 0.0
    %214 = vmatprep.subr.mxu0 0.0
    %215 = vmatpush1.xpose.msra.mxu0 0.0
    %216 = vmatprep.subr.mxu0 0.0
    %217 = vmatpush1.xpose.msra.mxu0 0.0
    %218 = vmatprep.subr.mxu0 0.0
    %219 = vmatpush1.xpose.msra.mxu0 0.0
    %220 = vmatprep.mubr.f32.mxu0 0.0
    %221 = vmatmul.mubr.f32.gmra.mrb[0].mxu0 %v152
    %v222 = vpop.f32.mrb[0].mxu0
    %v223 = vadd.f32 0.0, %v222
    %v224 = vpop.f32.mrb[0].mxu0
    %225 = vdwg.mxu0
    %227 = vrot.lane.b32.xlu0 %v145, 96
    %v228 = vpop.permute.xlu0 %227
    %v229 = vsel %vm151, %v145, 0
    %v231 = vsel %vm151, %v228, 0
    %233 = vmatprep.subr.mxu0 0.0
    %234 = vmatpush1.xpose.msra.mxu0 %v231
    %235 = vmatprep.subr.mxu0 0.0
    %236 = vmatpush1.xpose.msra.mxu0 0.0
    %237 = vmatprep.subr.mxu0 0.0
    %238 = vmatpush1.xpose.msra.mxu0 0.0
    %239 = vmatprep.subr.mxu0 0.0
    %240 = vmatpush1.xpose.msra.mxu0 0.0
    %241 = vmatprep.subr.mxu0 0.0
    %242 = vmatpush1.xpose.msra.mxu0 0.0
    %243 = vmatprep.subr.mxu0 0.0
    %244 = vmatpush1.xpose.msra.mxu0 0.0
    %245 = vmatprep.subr.mxu0 0.0
    %246 = vmatpush1.xpose.msra.mxu0 0.0
    %247 = vmatprep.subr.mxu0 0.0
    %248 = vmatpush1.xpose.msra.mxu0 0.0
    %249 = vmatprep.subr.mxu0 0.0
    %250 = vmatpush1.xpose.msra.mxu0 0.0
    %251 = vmatprep.subr.mxu0 0.0
    %252 = vmatpush1.xpose.msra.mxu0 0.0
    %253 = vmatprep.subr.mxu0 0.0
    %254 = vmatpush1.xpose.msra.mxu0 0.0
    %255 = vmatprep.subr.mxu0 0.0
    %256 = vmatpush1.xpose.msra.mxu0 0.0
    %257 = vmatprep.subr.mxu0 0.0
    %258 = vmatpush1.xpose.msra.mxu0 0.0
    %259 = vmatprep.subr.mxu0 0.0
    %260 = vmatpush1.xpose.msra.mxu0 0.0
    %261 = vmatprep.subr.mxu0 0.0
    %262 = vmatpush1.xpose.msra.mxu0 0.0
    %263 = vmatprep.subr.mxu0 0.0
    %264 = vmatpush1.xpose.msra.mxu0 0.0
    %265 = vmatprep.subr.mxu0 0.0
    %266 = vmatpush1.xpose.msra.mxu0 0.0
    %267 = vmatprep.subr.mxu0 0.0
    %268 = vmatpush1.xpose.msra.mxu0 0.0
    %269 = vmatprep.subr.mxu0 0.0
    %270 = vmatpush1.xpose.msra.mxu0 0.0
    %271 = vmatprep.subr.mxu0 0.0
    %272 = vmatpush1.xpose.msra.mxu0 0.0
    %273 = vmatprep.subr.mxu0 0.0
    %274 = vmatpush1.xpose.msra.mxu0 0.0
    %275 = vmatprep.subr.mxu0 0.0
    %276 = vmatpush1.xpose.msra.mxu0 0.0
    %277 = vmatprep.subr.mxu0 0.0
    %278 = vmatpush1.xpose.msra.mxu0 0.0
    %279 = vmatprep.subr.mxu0 0.0
    %280 = vmatpush1.xpose.msra.mxu0 0.0
    %281 = vmatprep.subr.mxu0 0.0
    %282 = vmatpush1.xpose.msra.mxu0 0.0
    %283 = vmatprep.subr.mxu0 0.0
    %284 = vmatpush1.xpose.msra.mxu0 0.0
    %285 = vmatprep.subr.mxu0 0.0
    %286 = vmatpush1.xpose.msra.mxu0 0.0
    %287 = vmatprep.subr.mxu0 0.0
    %288 = vmatpush1.xpose.msra.mxu0 0.0
    %289 = vmatprep.subr.mxu0 0.0
    %290 = vmatpush1.xpose.msra.mxu0 0.0
    %291 = vmatprep.subr.mxu0 0.0
    %292 = vmatpush1.xpose.msra.mxu0 0.0
    %293 = vmatprep.subr.mxu0 0.0
    %294 = vmatpush1.xpose.msra.mxu0 0.0
    %295 = vmatprep.subr.mxu0 0.0
    %296 = vmatpush1.xpose.msra.mxu0 0.0
    %297 = vmatprep.mubr.f32.mxu0 0.0
    %298 = vmatmul.mubr.f32.gmra.mrb[0].mxu0 %v229
    %v299 = vpop.f32.mrb[0].mxu0
    %v300 = vadd.f32 0.0, %v299
    %v301 = vpop.f32.mrb[0].mxu0
    %302 = vdwg.mxu0
    %v303 = vsel %vm151, %v223, -inf
    %v304 = vrot.slane %v303, 4
    %v305 = vmax.f32 %v303, %v304
    %v306 = vrot.slane %v305, 2
    %v307 = vmax.f32 %v305, %v306
    %v308 = vrot.slane %v307, 1
    %v309 = vmax.f32 %v307, %v308
    %v310 = vsel %vm151, %v300, -inf
    %v311 = vrot.slane %v310, 4
    %v312 = vmax.f32 %v310, %v311
    %v313 = vrot.slane %v312, 2
    %v314 = vmax.f32 %v312, %v313
    %v315 = vrot.slane %v314, 1
    %v316 = vmax.f32 %v314, %v315
    %v317 = vsub.f32 %v223, %v309
    %v318 = vsub.f32 %v300, %v316
    %v319 = vmul.f32 %v317, 1.442695
    %v320 = vpow.pop %v319
    %v321 = vmul.f32 %v318, 1.442695
    %v322 = vpow.pop %v321
    %v323 = vsel %vm151, %v320, 0.0
    %v324 = vrot.slane %v323, 4
    %v325 = vadd.f32 %v323, %v324
    %v326 = vrot.slane %v325, 2
    %v327 = vadd.f32 %v325, %v326
    %v328 = vrot.slane %v327, 1
    %v329 = vadd.f32 %v327, %v328
    %v330 = vsel %vm151, %v322, 0.0
    %v331 = vrot.slane %v330, 4
    %v332 = vadd.f32 %v330, %v331
    %v333 = vrot.slane %v332, 2
    %v334 = vadd.f32 %v332, %v333
    %v335 = vrot.slane %v334, 1
    %v336 = vadd.f32 %v334, %v335
    %v337 = vrcp.pop %v329
    %v338 = vmul.f32 %v320, %v337
    %v339 = vrcp.pop %v336
    %v340 = vmul.f32 %v322, %v339
    %341 = vrot.lane.b32.xlu0 %v140, 64
    %v342 = vpop.permute.xlu0 %341
    %v345 = vsel %vm151, %v338, 0
    %347 = vmatprep.subr.mxu0 0.0
    %348 = vmatpush1.msra.mxu0 %v342
    %349 = vmatprep.subr.mxu0 0.0
    %350 = vmatpush1.msra.mxu0 0.0
    %351 = vmatprep.subr.mxu0 0.0
    %352 = vmatpush1.msra.mxu0 0.0
    %353 = vmatprep.subr.mxu0 0.0
    %354 = vmatpush1.msra.mxu0 0.0
    %355 = vmatprep.subr.mxu0 0.0
    %356 = vmatpush1.msra.mxu0 0.0
    %357 = vmatprep.subr.mxu0 0.0
    %358 = vmatpush1.msra.mxu0 0.0
    %359 = vmatprep.subr.mxu0 0.0
    %360 = vmatpush1.msra.mxu0 0.0
    %361 = vmatprep.subr.mxu0 0.0
    %362 = vmatpush1.msra.mxu0 0.0
    %363 = vmatprep.subr.mxu0 0.0
    %364 = vmatpush1.msra.mxu0 0.0
    %365 = vmatprep.subr.mxu0 0.0
    %366 = vmatpush1.msra.mxu0 0.0
    %367 = vmatprep.subr.mxu0 0.0
    %368 = vmatpush1.msra.mxu0 0.0
    %369 = vmatprep.subr.mxu0 0.0
    %370 = vmatpush1.msra.mxu0 0.0
    %371 = vmatprep.subr.mxu0 0.0
    %372 = vmatpush1.msra.mxu0 0.0
    %373 = vmatprep.subr.mxu0 0.0
    %374 = vmatpush1.msra.mxu0 0.0
    %375 = vmatprep.subr.mxu0 0.0
    %376 = vmatpush1.msra.mxu0 0.0
    %377 = vmatprep.subr.mxu0 0.0
    %378 = vmatpush1.msra.mxu0 0.0
    %379 = vmatprep.subr.mxu0 0.0
    %380 = vmatpush1.msra.mxu0 0.0
    %381 = vmatprep.subr.mxu0 0.0
    %382 = vmatpush1.msra.mxu0 0.0
    %383 = vmatprep.subr.mxu0 0.0
    %384 = vmatpush1.msra.mxu0 0.0
    %385 = vmatprep.subr.mxu0 0.0
    %386 = vmatpush1.msra.mxu0 0.0
    %387 = vmatprep.subr.mxu0 0.0
    %388 = vmatpush1.msra.mxu0 0.0
    %389 = vmatprep.subr.mxu0 0.0
    %390 = vmatpush1.msra.mxu0 0.0
    %391 = vmatprep.subr.mxu0 0.0
    %392 = vmatpush1.msra.mxu0 0.0
    %393 = vmatprep.subr.mxu0 0.0
    %394 = vmatpush1.msra.mxu0 0.0
    %395 = vmatprep.subr.mxu0 0.0
    %396 = vmatpush1.msra.mxu0 0.0
    %397 = vmatprep.subr.mxu0 0.0
    %398 = vmatpush1.msra.mxu0 0.0
    %399 = vmatprep.subr.mxu0 0.0
    %400 = vmatpush1.msra.mxu0 0.0
    %401 = vmatprep.subr.mxu0 0.0
    %402 = vmatpush1.msra.mxu0 0.0
    %403 = vmatprep.subr.mxu0 0.0
    %404 = vmatpush1.msra.mxu0 0.0
    %405 = vmatprep.subr.mxu0 0.0
    %406 = vmatpush1.msra.mxu0 0.0
    %407 = vmatprep.subr.mxu0 0.0
    %408 = vmatpush1.msra.mxu0 0.0
    %409 = vmatprep.subr.mxu0 0.0
    %410 = vmatpush1.msra.mxu0 0.0
    %411 = vmatprep.mubr.f32.mxu0 0.0
    %412 = vmatmul.mubr.f32.gmra.mrb[0].mxu0 %v345
    %v413 = vpop.f32.mrb[0].mxu0
    %v414 = vadd.f32 0.0, %v413
    %v415 = vpop.f32.mrb[0].mxu0
    %416 = vdwg.mxu0
    %417 = vrot.lane.b32.xlu0 %v145, 64
    %v418 = vpop.permute.xlu0 %417
    %v421 = vsel %vm151, %v340, 0
    %423 = vmatprep.subr.mxu0 0.0
    %424 = vmatpush1.msra.mxu0 %v418
    %425 = vmatprep.subr.mxu0 0.0
    %426 = vmatpush1.msra.mxu0 0.0
    %427 = vmatprep.subr.mxu0 0.0
    %428 = vmatpush1.msra.mxu0 0.0
    %429 = vmatprep.subr.mxu0 0.0
    %430 = vmatpush1.msra.mxu0 0.0
    %431 = vmatprep.subr.mxu0 0.0
    %432 = vmatpush1.msra.mxu0 0.0
    %433 = vmatprep.subr.mxu0 0.0
    %434 = vmatpush1.msra.mxu0 0.0
    %435 = vmatprep.subr.mxu0 0.0
    %436 = vmatpush1.msra.mxu0 0.0
    %437 = vmatprep.subr.mxu0 0.0
    %438 = vmatpush1.msra.mxu0 0.0
    %439 = vmatprep.subr.mxu0 0.0
    %440 = vmatpush1.msra.mxu0 0.0
    %441 = vmatprep.subr.mxu0 0.0
    %442 = vmatpush1.msra.mxu0 0.0
    %443 = vmatprep.subr.mxu0 0.0
    %444 = vmatpush1.msra.mxu0 0.0
    %445 = vmatprep.subr.mxu0 0.0
    %446 = vmatpush1.msra.mxu0 0.0
    %447 = vmatprep.subr.mxu0 0.0
    %448 = vmatpush1.msra.mxu0 0.0
    %449 = vmatprep.subr.mxu0 0.0
    %450 = vmatpush1.msra.mxu0 0.0
    %451 = vmatprep.subr.mxu0 0.0
    %452 = vmatpush1.msra.mxu0 0.0
    %453 = vmatprep.subr.mxu0 0.0
    %454 = vmatpush1.msra.mxu0 0.0
    %455 = vmatprep.subr.mxu0 0.0
    %456 = vmatpush1.msra.mxu0 0.0
    %457 = vmatprep.subr.mxu0 0.0
    %458 = vmatpush1.msra.mxu0 0.0
    %459 = vmatprep.subr.mxu0 0.0
    %460 = vmatpush1.msra.mxu0 0.0
    %461 = vmatprep.subr.mxu0 0.0
    %462 = vmatpush1.msra.mxu0 0.0
    %463 = vmatprep.subr.mxu0 0.0
    %464 = vmatpush1.msra.mxu0 0.0
    %465 = vmatprep.subr.mxu0 0.0
    %466 = vmatpush1.msra.mxu0 0.0
    %467 = vmatprep.subr.mxu0 0.0
    %468 = vmatpush1.msra.mxu0 0.0
    %469 = vmatprep.subr.mxu0 0.0
    %470 = vmatpush1.msra.mxu0 0.0
    %471 = vmatprep.subr.mxu0 0.0
    %472 = vmatpush1.msra.mxu0 0.0
    %473 = vmatprep.subr.mxu0 0.0
    %474 = vmatpush1.msra.mxu0 0.0
    %475 = vmatprep.subr.mxu0 0.0
    %476 = vmatpush1.msra.mxu0 0.0
    %477 = vmatprep.subr.mxu0 0.0
    %478 = vmatpush1.msra.mxu0 0.0
    %479 = vmatprep.subr.mxu0 0.0
    %480 = vmatpush1.msra.mxu0 0.0
    %481 = vmatprep.subr.mxu0 0.0
    %482 = vmatpush1.msra.mxu0 0.0
    %483 = vmatprep.subr.mxu0 0.0
    %484 = vmatpush1.msra.mxu0 0.0
    %485 = vmatprep.subr.mxu0 0.0
    %486 = vmatpush1.msra.mxu0 0.0
    %487 = vmatprep.mubr.f32.mxu0 0.0
    %488 = vmatmul.mubr.f32.gmra.mrb[0].mxu0 %v421
    %v489 = vpop.f32.mrb[0].mxu0
    %v490 = vadd.f32 0.0, %v489
    %v491 = vpop.f32.mrb[0].mxu0
    %492 = vdwg.mxu0
    %493 = vrot.lane.b32.xlu0 %v140, 120
    %v494 = vpop.permute.xlu0 %493
    %495 = vrot.lane.b32.xlu0 %v140, 88
    %v496 = vpop.permute.xlu0 %495
    %v497 = vsel %vm151, %v494, 0
    %v499 = vsel %vm151, %v496, 0
    %501 = vmatprep.subr.mxu0 0.0
    %502 = vmatpush1.xpose.msra.mxu0 %v499
    %503 = vmatprep.subr.mxu0 0.0
    %504 = vmatpush1.xpose.msra.mxu0 0.0
    %505 = vmatprep.subr.mxu0 0.0
    %506 = vmatpush1.xpose.msra.mxu0 0.0
    %507 = vmatprep.subr.mxu0 0.0
    %508 = vmatpush1.xpose.msra.mxu0 0.0
    %509 = vmatprep.subr.mxu0 0.0
    %510 = vmatpush1.xpose.msra.mxu0 0.0
    %511 = vmatprep.subr.mxu0 0.0
    %512 = vmatpush1.xpose.msra.mxu0 0.0
    %513 = vmatprep.subr.mxu0 0.0
    %514 = vmatpush1.xpose.msra.mxu0 0.0
    %515 = vmatprep.subr.mxu0 0.0
    %516 = vmatpush1.xpose.msra.mxu0 0.0
    %517 = vmatprep.subr.mxu0 0.0
    %518 = vmatpush1.xpose.msra.mxu0 0.0
    %519 = vmatprep.subr.mxu0 0.0
    %520 = vmatpush1.xpose.msra.mxu0 0.0
    %521 = vmatprep.subr.mxu0 0.0
    %522 = vmatpush1.xpose.msra.mxu0 0.0
    %523 = vmatprep.subr.mxu0 0.0
    %524 = vmatpush1.xpose.msra.mxu0 0.0
    %525 = vmatprep.subr.mxu0 0.0
    %526 = vmatpush1.xpose.msra.mxu0 0.0
    %527 = vmatprep.subr.mxu0 0.0
    %528 = vmatpush1.xpose.msra.mxu0 0.0
    %529 = vmatprep.subr.mxu0 0.0
    %530 = vmatpush1.xpose.msra.mxu0 0.0
    %531 = vmatprep.subr.mxu0 0.0
    %532 = vmatpush1.xpose.msra.mxu0 0.0
    %533 = vmatprep.subr.mxu0 0.0
    %534 = vmatpush1.xpose.msra.mxu0 0.0
    %535 = vmatprep.subr.mxu0 0.0
    %536 = vmatpush1.xpose.msra.mxu0 0.0
    %537 = vmatprep.subr.mxu0 0.0
    %538 = vmatpush1.xpose.msra.mxu0 0.0
    %539 = vmatprep.subr.mxu0 0.0
    %540 = vmatpush1.xpose.msra.mxu0 0.0
    %541 = vmatprep.subr.mxu0 0.0
    %542 = vmatpush1.xpose.msra.mxu0 0.0
    %543 = vmatprep.subr.mxu0 0.0
    %544 = vmatpush1.xpose.msra.mxu0 0.0
    %545 = vmatprep.subr.mxu0 0.0
    %546 = vmatpush1.xpose.msra.mxu0 0.0
    %547 = vmatprep.subr.mxu0 0.0
    %548 = vmatpush1.xpose.msra.mxu0 0.0
    %549 = vmatprep.subr.mxu0 0.0
    %550 = vmatpush1.xpose.msra.mxu0 0.0
    %551 = vmatprep.subr.mxu0 0.0
    %552 = vmatpush1.xpose.msra.mxu0 0.0
    %553 = vmatprep.subr.mxu0 0.0
    %554 = vmatpush1.xpose.msra.mxu0 0.0
    %555 = vmatprep.subr.mxu0 0.0
    %556 = vmatpush1.xpose.msra.mxu0 0.0
    %557 = vmatprep.subr.mxu0 0.0
    %558 = vmatpush1.xpose.msra.mxu0 0.0
    %559 = vmatprep.subr.mxu0 0.0
    %560 = vmatpush1.xpose.msra.mxu0 0.0
    %561 = vmatprep.subr.mxu0 0.0
    %562 = vmatpush1.xpose.msra.mxu0 0.0
    %563 = vmatprep.subr.mxu0 0.0
    %564 = vmatpush1.xpose.msra.mxu0 0.0
    %565 = vmatprep.mubr.f32.mxu0 0.0
    %566 = vmatmul.mubr.f32.gmra.mrb[0].mxu0 %v497
    %v567 = vpop.f32.mrb[0].mxu0
    %v568 = vadd.f32 0.0, %v567
    %v569 = vpop.f32.mrb[0].mxu0
    %570 = vdwg.mxu0
    %571 = vrot.lane.b32.xlu0 %v145, 120
    %v572 = vpop.permute.xlu0 %571
    %573 = vrot.lane.b32.xlu0 %v145, 88
    %v574 = vpop.permute.xlu0 %573
    %v575 = vsel %vm151, %v572, 0
    %v577 = vsel %vm151, %v574, 0
    %579 = vmatprep.subr.mxu0 0.0
    %580 = vmatpush1.xpose.msra.mxu0 %v577
    %581 = vmatprep.subr.mxu0 0.0
    %582 = vmatpush1.xpose.msra.mxu0 0.0
    %583 = vmatprep.subr.mxu0 0.0
    %584 = vmatpush1.xpose.msra.mxu0 0.0
    %585 = vmatprep.subr.mxu0 0.0
    %586 = vmatpush1.xpose.msra.mxu0 0.0
    %587 = vmatprep.subr.mxu0 0.0
    %588 = vmatpush1.xpose.msra.mxu0 0.0
    %589 = vmatprep.subr.mxu0 0.0
    %590 = vmatpush1.xpose.msra.mxu0 0.0
    %591 = vmatprep.subr.mxu0 0.0
    %592 = vmatpush1.xpose.msra.mxu0 0.0
    %593 = vmatprep.subr.mxu0 0.0
    %594 = vmatpush1.xpose.msra.mxu0 0.0
    %595 = vmatprep.subr.mxu0 0.0
    %596 = vmatpush1.xpose.msra.mxu0 0.0
    %597 = vmatprep.subr.mxu0 0.0
    %598 = vmatpush1.xpose.msra.mxu0 0.0
    %599 = vmatprep.subr.mxu0 0.0
    %600 = vmatpush1.xpose.msra.mxu0 0.0
    %601 = vmatprep.subr.mxu0 0.0
    %602 = vmatpush1.xpose.msra.mxu0 0.0
    %603 = vmatprep.subr.mxu0 0.0
    %604 = vmatpush1.xpose.msra.mxu0 0.0
    %605 = vmatprep.subr.mxu0 0.0
    %606 = vmatpush1.xpose.msra.mxu0 0.0
    %607 = vmatprep.subr.mxu0 0.0
    %608 = vmatpush1.xpose.msra.mxu0 0.0
    %609 = vmatprep.subr.mxu0 0.0
    %610 = vmatpush1.xpose.msra.mxu0 0.0
    %611 = vmatprep.subr.mxu0 0.0
    %612 = vmatpush1.xpose.msra.mxu0 0.0
    %613 = vmatprep.subr.mxu0 0.0
    %614 = vmatpush1.xpose.msra.mxu0 0.0
    %615 = vmatprep.subr.mxu0 0.0
    %616 = vmatpush1.xpose.msra.mxu0 0.0
    %617 = vmatprep.subr.mxu0 0.0
    %618 = vmatpush1.xpose.msra.mxu0 0.0
    %619 = vmatprep.subr.mxu0 0.0
    %620 = vmatpush1.xpose.msra.mxu0 0.0
    %621 = vmatprep.subr.mxu0 0.0
    %622 = vmatpush1.xpose.msra.mxu0 0.0
    %623 = vmatprep.subr.mxu0 0.0
    %624 = vmatpush1.xpose.msra.mxu0 0.0
    %625 = vmatprep.subr.mxu0 0.0
    %626 = vmatpush1.xpose.msra.mxu0 0.0
    %627 = vmatprep.subr.mxu0 0.0
    %628 = vmatpush1.xpose.msra.mxu0 0.0
    %629 = vmatprep.subr.mxu0 0.0
    %630 = vmatpush1.xpose.msra.mxu0 0.0
    %631 = vmatprep.subr.mxu0 0.0
    %632 = vmatpush1.xpose.msra.mxu0 0.0
    %633 = vmatprep.subr.mxu0 0.0
    %634 = vmatpush1.xpose.msra.mxu0 0.0
    %635 = vmatprep.subr.mxu0 0.0
    %636 = vmatpush1.xpose.msra.mxu0 0.0
    %637 = vmatprep.subr.mxu0 0.0
    %638 = vmatpush1.xpose.msra.mxu0 0.0
    %639 = vmatprep.subr.mxu0 0.0
    %640 = vmatpush1.xpose.msra.mxu0 0.0
    %641 = vmatprep.subr.mxu0 0.0
    %642 = vmatpush1.xpose.msra.mxu0 0.0
    %643 = vmatprep.mubr.f32.mxu0 0.0
    %644 = vmatmul.mubr.f32.gmra.mrb[0].mxu0 %v575
    %v645 = vpop.f32.mrb[0].mxu0
    %v646 = vadd.f32 0.0, %v645
    %v647 = vpop.f32.mrb[0].mxu0
    %648 = vdwg.mxu0
    %v649 = vsel %vm151, %v568, -inf
    %v650 = vrot.slane %v649, 4
    %v651 = vmax.f32 %v649, %v650
    %v652 = vrot.slane %v651, 2
    %v653 = vmax.f32 %v651, %v652
    %v654 = vrot.slane %v653, 1
    %v655 = vmax.f32 %v653, %v654
    %v656 = vsel %vm151, %v646, -inf
    %v657 = vrot.slane %v656, 4
    %v658 = vmax.f32 %v656, %v657
    %v659 = vrot.slane %v658, 2
    %v660 = vmax.f32 %v658, %v659
    %v661 = vrot.slane %v660, 1
    %v662 = vmax.f32 %v660, %v661
    %v663 = vsub.f32 %v568, %v655
    %v664 = vsub.f32 %v646, %v662
    %v665 = vmul.f32 %v663, 1.442695
    %v666 = vpow.pop %v665
    %v667 = vmul.f32 %v664, 1.442695
    %v668 = vpow.pop %v667
    %v669 = vsel %vm151, %v666, 0.0
    %v670 = vrot.slane %v669, 4
    %v671 = vadd.f32 %v669, %v670
    %v672 = vrot.slane %v671, 2
    %v673 = vadd.f32 %v671, %v672
    %v674 = vrot.slane %v673, 1
    %v675 = vadd.f32 %v673, %v674
    %v676 = vsel %vm151, %v668, 0.0
    %v677 = vrot.slane %v676, 4
    %v678 = vadd.f32 %v676, %v677
    %v679 = vrot.slane %v678, 2
    %v680 = vadd.f32 %v678, %v679
    %v681 = vrot.slane %v680, 1
    %v682 = vadd.f32 %v680, %v681
    %v683 = vrcp.pop %v675
    %v684 = vmul.f32 %v666, %v683
    %v685 = vrcp.pop %v682
    %v686 = vmul.f32 %v668, %v685
    %687 = vrot.lane.b32.xlu0 %v140, 56
    %v688 = vpop.permute.xlu0 %687
    %v691 = vsel %vm151, %v684, 0
    %693 = vmatprep.subr.mxu0 0.0
    %694 = vmatpush1.msra.mxu0 %v688
    %695 = vmatprep.subr.mxu0 0.0
    %696 = vmatpush1.msra.mxu0 0.0
    %697 = vmatprep.subr.mxu0 0.0
    %698 = vmatpush1.msra.mxu0 0.0
    %699 = vmatprep.subr.mxu0 0.0
    %700 = vmatpush1.msra.mxu0 0.0
    %701 = vmatprep.subr.mxu0 0.0
    %702 = vmatpush1.msra.mxu0 0.0
    %703 = vmatprep.subr.mxu0 0.0
    %704 = vmatpush1.msra.mxu0 0.0
    %705 = vmatprep.subr.mxu0 0.0
    %706 = vmatpush1.msra.mxu0 0.0
    %707 = vmatprep.subr.mxu0 0.0
    %708 = vmatpush1.msra.mxu0 0.0
    %709 = vmatprep.subr.mxu0 0.0
    %710 = vmatpush1.msra.mxu0 0.0
    %711 = vmatprep.subr.mxu0 0.0
    %712 = vmatpush1.msra.mxu0 0.0
    %713 = vmatprep.subr.mxu0 0.0
    %714 = vmatpush1.msra.mxu0 0.0
    %715 = vmatprep.subr.mxu0 0.0
    %716 = vmatpush1.msra.mxu0 0.0
    %717 = vmatprep.subr.mxu0 0.0
    %718 = vmatpush1.msra.mxu0 0.0
    %719 = vmatprep.subr.mxu0 0.0
    %720 = vmatpush1.msra.mxu0 0.0
    %721 = vmatprep.subr.mxu0 0.0
    %722 = vmatpush1.msra.mxu0 0.0
    %723 = vmatprep.subr.mxu0 0.0
    %724 = vmatpush1.msra.mxu0 0.0
    %725 = vmatprep.subr.mxu0 0.0
    %726 = vmatpush1.msra.mxu0 0.0
    %727 = vmatprep.subr.mxu0 0.0
    %728 = vmatpush1.msra.mxu0 0.0
    %729 = vmatprep.subr.mxu0 0.0
    %730 = vmatpush1.msra.mxu0 0.0
    %731 = vmatprep.subr.mxu0 0.0
    %732 = vmatpush1.msra.mxu0 0.0
    %733 = vmatprep.subr.mxu0 0.0
    %734 = vmatpush1.msra.mxu0 0.0
    %735 = vmatprep.subr.mxu0 0.0
    %736 = vmatpush1.msra.mxu0 0.0
    %737 = vmatprep.subr.mxu0 0.0
    %738 = vmatpush1.msra.mxu0 0.0
    %739 = vmatprep.subr.mxu0 0.0
    %740 = vmatpush1.msra.mxu0 0.0
    %741 = vmatprep.subr.mxu0 0.0
    %742 = vmatpush1.msra.mxu0 0.0
    %743 = vmatprep.subr.mxu0 0.0
    %744 = vmatpush1.msra.mxu0 0.0
    %745 = vmatprep.subr.mxu0 0.0
    %746 = vmatpush1.msra.mxu0 0.0
    %747 = vmatprep.subr.mxu0 0.0
    %748 = vmatpush1.msra.mxu0 0.0
    %749 = vmatprep.subr.mxu0 0.0
    %750 = vmatpush1.msra.mxu0 0.0
    %751 = vmatprep.subr.mxu0 0.0
    %752 = vmatpush1.msra.mxu0 0.0
    %753 = vmatprep.subr.mxu0 0.0
    %754 = vmatpush1.msra.mxu0 0.0
    %755 = vmatprep.subr.mxu0 0.0
    %756 = vmatpush1.msra.mxu0 0.0
    %757 = vmatprep.mubr.f32.mxu0 0.0
    %758 = vmatmul.mubr.f32.gmra.mrb[0].mxu0 %v691
    %v759 = vpop.f32.mrb[0].mxu0
    %v760 = vadd.f32 0.0, %v759
    %v761 = vpop.f32.mrb[0].mxu0
    %762 = vdwg.mxu0
    %763 = vrot.lane.b32.xlu0 %v145, 56
    %v764 = vpop.permute.xlu0 %763
    %v767 = vsel %vm151, %v686, 0
    %769 = vmatprep.subr.mxu0 0.0
    %770 = vmatpush1.msra.mxu0 %v764
    %771 = vmatprep.subr.mxu0 0.0
    %772 = vmatpush1.msra.mxu0 0.0
    %773 = vmatprep.subr.mxu0 0.0
    %774 = vmatpush1.msra.mxu0 0.0
    %775 = vmatprep.subr.mxu0 0.0
    %776 = vmatpush1.msra.mxu0 0.0
    %777 = vmatprep.subr.mxu0 0.0
    %778 = vmatpush1.msra.mxu0 0.0
    %779 = vmatprep.subr.mxu0 0.0
    %780 = vmatpush1.msra.mxu0 0.0
    %781 = vmatprep.subr.mxu0 0.0
    %782 = vmatpush1.msra.mxu0 0.0
    %783 = vmatprep.subr.mxu0 0.0
    %784 = vmatpush1.msra.mxu0 0.0
    %785 = vmatprep.subr.mxu0 0.0
    %786 = vmatpush1.msra.mxu0 0.0
    %787 = vmatprep.subr.mxu0 0.0
    %788 = vmatpush1.msra.mxu0 0.0
    %789 = vmatprep.subr.mxu0 0.0
    %790 = vmatpush1.msra.mxu0 0.0
    %791 = vmatprep.subr.mxu0 0.0
    %792 = vmatpush1.msra.mxu0 0.0
    %793 = vmatprep.subr.mxu0 0.0
    %794 = vmatpush1.msra.mxu0 0.0
    %795 = vmatprep.subr.mxu0 0.0
    %796 = vmatpush1.msra.mxu0 0.0
    %797 = vmatprep.subr.mxu0 0.0
    %798 = vmatpush1.msra.mxu0 0.0
    %799 = vmatprep.subr.mxu0 0.0
    %800 = vmatpush1.msra.mxu0 0.0
    %801 = vmatprep.subr.mxu0 0.0
    %802 = vmatpush1.msra.mxu0 0.0
    %803 = vmatprep.subr.mxu0 0.0
    %804 = vmatpush1.msra.mxu0 0.0
    %805 = vmatprep.subr.mxu0 0.0
    %806 = vmatpush1.msra.mxu0 0.0
    %807 = vmatprep.subr.mxu0 0.0
    %808 = vmatpush1.msra.mxu0 0.0
    %809 = vmatprep.subr.mxu0 0.0
    %810 = vmatpush1.msra.mxu0 0.0
    %811 = vmatprep.subr.mxu0 0.0
    %812 = vmatpush1.msra.mxu0 0.0
    %813 = vmatprep.subr.mxu0 0.0
    %814 = vmatpush1.msra.mxu0 0.0
    %815 = vmatprep.subr.mxu0 0.0
    %816 = vmatpush1.msra.mxu0 0.0
    %817 = vmatprep.subr.mxu0 0.0
    %818 = vmatpush1.msra.mxu0 0.0
    %819 = vmatprep.subr.mxu0 0.0
    %820 = vmatpush1.msra.mxu0 0.0
    %821 = vmatprep.subr.mxu0 0.0
    %822 = vmatpush1.msra.mxu0 0.0
    %823 = vmatprep.subr.mxu0 0.0
    %824 = vmatpush1.msra.mxu0 0.0
    %825 = vmatprep.subr.mxu0 0.0
    %826 = vmatpush1.msra.mxu0 0.0
    %827 = vmatprep.subr.mxu0 0.0
    %828 = vmatpush1.msra.mxu0 0.0
    %829 = vmatprep.subr.mxu0 0.0
    %830 = vmatpush1.msra.mxu0 0.0
    %831 = vmatprep.subr.mxu0 0.0
    %832 = vmatpush1.msra.mxu0 0.0
    %833 = vmatprep.mubr.f32.mxu0 0.0
    %834 = vmatmul.mubr.f32.gmra.mrb[0].mxu0 %v767
    %v835 = vpop.f32.mrb[0].mxu0
    %v836 = vadd.f32 0.0, %v835
    %v837 = vpop.f32.mrb[0].mxu0
    %838 = vdwg.mxu0
    %839 = vrot.lane.b32.xlu0 %v140, 112
    %v840 = vpop.permute.xlu0 %839
    %841 = vrot.lane.b32.xlu0 %v140, 80
    %v842 = vpop.permute.xlu0 %841
    %v843 = vsel %vm151, %v840, 0
    %v845 = vsel %vm151, %v842, 0
    %847 = vmatprep.subr.mxu0 0.0
    %848 = vmatpush1.xpose.msra.mxu0 %v845
    %849 = vmatprep.subr.mxu0 0.0
    %850 = vmatpush1.xpose.msra.mxu0 0.0
    %851 = vmatprep.subr.mxu0 0.0
    %852 = vmatpush1.xpose.msra.mxu0 0.0
    %853 = vmatprep.subr.mxu0 0.0
    %854 = vmatpush1.xpose.msra.mxu0 0.0
    %855 = vmatprep.subr.mxu0 0.0
    %856 = vmatpush1.xpose.msra.mxu0 0.0
    %857 = vmatprep.subr.mxu0 0.0
    %858 = vmatpush1.xpose.msra.mxu0 0.0
    %859 = vmatprep.subr.mxu0 0.0
    %860 = vmatpush1.xpose.msra.mxu0 0.0
    %861 = vmatprep.subr.mxu0 0.0
    %862 = vmatpush1.xpose.msra.mxu0 0.0
    %863 = vmatprep.subr.mxu0 0.0
    %864 = vmatpush1.xpose.msra.mxu0 0.0
    %865 = vmatprep.subr.mxu0 0.0
    %866 = vmatpush1.xpose.msra.mxu0 0.0
    %867 = vmatprep.subr.mxu0 0.0
    %868 = vmatpush1.xpose.msra.mxu0 0.0
    %869 = vmatprep.subr.mxu0 0.0
    %870 = vmatpush1.xpose.msra.mxu0 0.0
    %871 = vmatprep.subr.mxu0 0.0
    %872 = vmatpush1.xpose.msra.mxu0 0.0
    %873 = vmatprep.subr.mxu0 0.0
    %874 = vmatpush1.xpose.msra.mxu0 0.0
    %875 = vmatprep.subr.mxu0 0.0
    %876 = vmatpush1.xpose.msra.mxu0 0.0
    %877 = vmatprep.subr.mxu0 0.0
    %878 = vmatpush1.xpose.msra.mxu0 0.0
    %879 = vmatprep.subr.mxu0 0.0
    %880 = vmatpush1.xpose.msra.mxu0 0.0
    %881 = vmatprep.subr.mxu0 0.0
    %882 = vmatpush1.xpose.msra.mxu0 0.0
    %883 = vmatprep.subr.mxu0 0.0
    %884 = vmatpush1.xpose.msra.mxu0 0.0
    %885 = vmatprep.subr.mxu0 0.0
    %886 = vmatpush1.xpose.msra.mxu0 0.0
    %887 = vmatprep.subr.mxu0 0.0
    %888 = vmatpush1.xpose.msra.mxu0 0.0
    %889 = vmatprep.subr.mxu0 0.0
    %890 = vmatpush1.xpose.msra.mxu0 0.0
    %891 = vmatprep.subr.mxu0 0.0
    %892 = vmatpush1.xpose.msra.mxu0 0.0
    %893 = vmatprep.subr.mxu0 0.0
    %894 = vmatpush1.xpose.msra.mxu0 0.0
    %895 = vmatprep.subr.mxu0 0.0
    %896 = vmatpush1.xpose.msra.mxu0 0.0
    %897 = vmatprep.subr.mxu0 0.0
    %898 = vmatpush1.xpose.msra.mxu0 0.0
    %899 = vmatprep.subr.mxu0 0.0
    %900 = vmatpush1.xpose.msra.mxu0 0.0
    %901 = vmatprep.subr.mxu0 0.0
    %902 = vmatpush1.xpose.msra.mxu0 0.0
    %903 = vmatprep.subr.mxu0 0.0
    %904 = vmatpush1.xpose.msra.mxu0 0.0
    %905 = vmatprep.subr.mxu0 0.0
    %906 = vmatpush1.xpose.msra.mxu0 0.0
    %907 = vmatprep.subr.mxu0 0.0
    %908 = vmatpush1.xpose.msra.mxu0 0.0
    %909 = vmatprep.subr.mxu0 0.0
    %910 = vmatpush1.xpose.msra.mxu0 0.0
    %911 = vmatprep.mubr.f32.mxu0 0.0
    %912 = vmatmul.mubr.f32.gmra.mrb[0].mxu0 %v843
    %v913 = vpop.f32.mrb[0].mxu0
    %v914 = vadd.f32 0.0, %v913
    %v915 = vpop.f32.mrb[0].mxu0
    %916 = vdwg.mxu0
    %917 = vrot.lane.b32.xlu0 %v145, 112
    %v918 = vpop.permute.xlu0 %917
    %919 = vrot.lane.b32.xlu0 %v145, 80
    %v920 = vpop.permute.xlu0 %919
    %v921 = vsel %vm151, %v918, 0
    %v923 = vsel %vm151, %v920, 0
    %925 = vmatprep.subr.mxu0 0.0
    %926 = vmatpush1.xpose.msra.mxu0 %v923
    %927 = vmatprep.subr.mxu0 0.0
    %928 = vmatpush1.xpose.msra.mxu0 0.0
    %929 = vmatprep.subr.mxu0 0.0
    %930 = vmatpush1.xpose.msra.mxu0 0.0
    %931 = vmatprep.subr.mxu0 0.0
    %932 = vmatpush1.xpose.msra.mxu0 0.0
    %933 = vmatprep.subr.mxu0 0.0
    %934 = vmatpush1.xpose.msra.mxu0 0.0
    %935 = vmatprep.subr.mxu0 0.0
    %936 = vmatpush1.xpose.msra.mxu0 0.0
    %937 = vmatprep.subr.mxu0 0.0
    %938 = vmatpush1.xpose.msra.mxu0 0.0
    %939 = vmatprep.subr.mxu0 0.0
    %940 = vmatpush1.xpose.msra.mxu0 0.0
    %941 = vmatprep.subr.mxu0 0.0
    %942 = vmatpush1.xpose.msra.mxu0 0.0
    %943 = vmatprep.subr.mxu0 0.0
    %944 = vmatpush1.xpose.msra.mxu0 0.0
    %945 = vmatprep.subr.mxu0 0.0
    %946 = vmatpush1.xpose.msra.mxu0 0.0
    %947 = vmatprep.subr.mxu0 0.0
    %948 = vmatpush1.xpose.msra.mxu0 0.0
    %949 = vmatprep.subr.mxu0 0.0
    %950 = vmatpush1.xpose.msra.mxu0 0.0
    %951 = vmatprep.subr.mxu0 0.0
    %952 = vmatpush1.xpose.msra.mxu0 0.0
    %953 = vmatprep.subr.mxu0 0.0
    %954 = vmatpush1.xpose.msra.mxu0 0.0
    %955 = vmatprep.subr.mxu0 0.0
    %956 = vmatpush1.xpose.msra.mxu0 0.0
    %957 = vmatprep.subr.mxu0 0.0
    %958 = vmatpush1.xpose.msra.mxu0 0.0
    %959 = vmatprep.subr.mxu0 0.0
    %960 = vmatpush1.xpose.msra.mxu0 0.0
    %961 = vmatprep.subr.mxu0 0.0
    %962 = vmatpush1.xpose.msra.mxu0 0.0
    %963 = vmatprep.subr.mxu0 0.0
    %964 = vmatpush1.xpose.msra.mxu0 0.0
    %965 = vmatprep.subr.mxu0 0.0
    %966 = vmatpush1.xpose.msra.mxu0 0.0
    %967 = vmatprep.subr.mxu0 0.0
    %968 = vmatpush1.xpose.msra.mxu0 0.0
    %969 = vmatprep.subr.mxu0 0.0
    %970 = vmatpush1.xpose.msra.mxu0 0.0
    %971 = vmatprep.subr.mxu0 0.0
    %972 = vmatpush1.xpose.msra.mxu0 0.0
    %973 = vmatprep.subr.mxu0 0.0
    %974 = vmatpush1.xpose.msra.mxu0 0.0
    %975 = vmatprep.subr.mxu0 0.0
    %976 = vmatpush1.xpose.msra.mxu0 0.0
    %977 = vmatprep.subr.mxu0 0.0
    %978 = vmatpush1.xpose.msra.mxu0 0.0
    %979 = vmatprep.subr.mxu0 0.0
    %980 = vmatpush1.xpose.msra.mxu0 0.0
    %981 = vmatprep.subr.mxu0 0.0
    %982 = vmatpush1.xpose.msra.mxu0 0.0
    %983 = vmatprep.subr.mxu0 0.0
    %984 = vmatpush1.xpose.msra.mxu0 0.0
    %985 = vmatprep.subr.mxu0 0.0
    %986 = vmatpush1.xpose.msra.mxu0 0.0
    %987 = vmatprep.subr.mxu0 0.0
    %988 = vmatpush1.xpose.msra.mxu0 0.0
    %989 = vmatprep.mubr.f32.mxu0 0.0
    %990 = vmatmul.mubr.f32.gmra.mrb[0].mxu0 %v921
    %v991 = vpop.f32.mrb[0].mxu0
    %v992 = vadd.f32 0.0, %v991
    %v993 = vpop.f32.mrb[0].mxu0
    %994 = vdwg.mxu0
    %v995 = vsel %vm151, %v914, -inf
    %v996 = vrot.slane %v995, 4
    %v997 = vmax.f32 %v995, %v996
    %v998 = vrot.slane %v997, 2
    %v999 = vmax.f32 %v997, %v998
    %v1000 = vrot.slane %v999, 1
    %v1001 = vmax.f32 %v999, %v1000
    %v1002 = vsel %vm151, %v992, -inf
    %v1003 = vrot.slane %v1002, 4
    %v1004 = vmax.f32 %v1002, %v1003
    %v1005 = vrot.slane %v1004, 2
    %v1006 = vmax.f32 %v1004, %v1005
    %v1007 = vrot.slane %v1006, 1
    %v1008 = vmax.f32 %v1006, %v1007
    %v1009 = vsub.f32 %v914, %v1001
    %v1010 = vsub.f32 %v992, %v1008
    %v1011 = vmul.f32 %v1009, 1.442695
    %v1012 = vpow.pop %v1011
    %v1013 = vmul.f32 %v1010, 1.442695
    %v1014 = vpow.pop %v1013
    %v1015 = vsel %vm151, %v1012, 0.0
    %v1016 = vrot.slane %v1015, 4
    %v1017 = vadd.f32 %v1015, %v1016
    %v1018 = vrot.slane %v1017, 2
    %v1019 = vadd.f32 %v1017, %v1018
    %v1020 = vrot.slane %v1019, 1
    %v1021 = vadd.f32 %v1019, %v1020
    %v1022 = vsel %vm151, %v1014, 0.0
    %v1023 = vrot.slane %v1022, 4
    %v1024 = vadd.f32 %v1022, %v1023
    %v1025 = vrot.slane %v1024, 2
    %v1026 = vadd.f32 %v1024, %v1025
    %v1027 = vrot.slane %v1026, 1
    %v1028 = vadd.f32 %v1026, %v1027
    %v1029 = vrcp.pop %v1021
    %v1030 = vmul.f32 %v1012, %v1029
    %v1031 = vrcp.pop %v1028
    %v1032 = vmul.f32 %v1014, %v1031
    %1033 = vrot.lane.b32.xlu0 %v140, 48
    %v1034 = vpop.permute.xlu0 %1033
    %v1037 = vsel %vm151, %v1030, 0
    %1039 = vmatprep.subr.mxu0 0.0
    %1040 = vmatpush1.msra.mxu0 %v1034
    %1041 = vmatprep.subr.mxu0 0.0
    %1042 = vmatpush1.msra.mxu0 0.0
    %1043 = vmatprep.subr.mxu0 0.0
    %1044 = vmatpush1.msra.mxu0 0.0
    %1045 = vmatprep.subr.mxu0 0.0
    %1046 = vmatpush1.msra.mxu0 0.0
    %1047 = vmatprep.subr.mxu0 0.0
    %1048 = vmatpush1.msra.mxu0 0.0
    %1049 = vmatprep.subr.mxu0 0.0
    %1050 = vmatpush1.msra.mxu0 0.0
    %1051 = vmatprep.subr.mxu0 0.0
    %1052 = vmatpush1.msra.mxu0 0.0
    %1053 = vmatprep.subr.mxu0 0.0
    %1054 = vmatpush1.msra.mxu0 0.0
    %1055 = vmatprep.subr.mxu0 0.0
    %1056 = vmatpush1.msra.mxu0 0.0
    %1057 = vmatprep.subr.mxu0 0.0
    %1058 = vmatpush1.msra.mxu0 0.0
    %1059 = vmatprep.subr.mxu0 0.0
    %1060 = vmatpush1.msra.mxu0 0.0
    %1061 = vmatprep.subr.mxu0 0.0
    %1062 = vmatpush1.msra.mxu0 0.0
    %1063 = vmatprep.subr.mxu0 0.0
    %1064 = vmatpush1.msra.mxu0 0.0
    %1065 = vmatprep.subr.mxu0 0.0
    %1066 = vmatpush1.msra.mxu0 0.0
    %1067 = vmatprep.subr.mxu0 0.0
    %1068 = vmatpush1.msra.mxu0 0.0
    %1069 = vmatprep.subr.mxu0 0.0
    %1070 = vmatpush1.msra.mxu0 0.0
    %1071 = vmatprep.subr.mxu0 0.0
    %1072 = vmatpush1.msra.mxu0 0.0
    %1073 = vmatprep.subr.mxu0 0.0
    %1074 = vmatpush1.msra.mxu0 0.0
    %1075 = vmatprep.subr.mxu0 0.0
    %1076 = vmatpush1.msra.mxu0 0.0
    %1077 = vmatprep.subr.mxu0 0.0
    %1078 = vmatpush1.msra.mxu0 0.0
    %1079 = vmatprep.subr.mxu0 0.0
    %1080 = vmatpush1.msra.mxu0 0.0
    %1081 = vmatprep.subr.mxu0 0.0
    %1082 = vmatpush1.msra.mxu0 0.0
    %1083 = vmatprep.subr.mxu0 0.0
    %1084 = vmatpush1.msra.mxu0 0.0
    %1085 = vmatprep.subr.mxu0 0.0
    %1086 = vmatpush1.msra.mxu0 0.0
    %1087 = vmatprep.subr.mxu0 0.0
    %1088 = vmatpush1.msra.mxu0 0.0
    %1089 = vmatprep.subr.mxu0 0.0
    %1090 = vmatpush1.msra.mxu0 0.0
    %1091 = vmatprep.subr.mxu0 0.0
    %1092 = vmatpush1.msra.mxu0 0.0
    %1093 = vmatprep.subr.mxu0 0.0
    %1094 = vmatpush1.msra.mxu0 0.0
    %1095 = vmatprep.subr.mxu0 0.0
    %1096 = vmatpush1.msra.mxu0 0.0
    %1097 = vmatprep.subr.mxu0 0.0
    %1098 = vmatpush1.msra.mxu0 0.0
    %1099 = vmatprep.subr.mxu0 0.0
    %1100 = vmatpush1.msra.mxu0 0.0
    %1101 = vmatprep.subr.mxu0 0.0
    %1102 = vmatpush1.msra.mxu0 0.0
    %1103 = vmatprep.mubr.f32.mxu0 0.0
    %1104 = vmatmul.mubr.f32.gmra.mrb[0].mxu0 %v1037
    %v1105 = vpop.f32.mrb[0].mxu0
    %v1106 = vadd.f32 0.0, %v1105
    %v1107 = vpop.f32.mrb[0].mxu0
    %1108 = vdwg.mxu0
    %1109 = vrot.lane.b32.xlu0 %v145, 48
    %v1110 = vpop.permute.xlu0 %1109
    %v1113 = vsel %vm151, %v1032, 0
    %1115 = vmatprep.subr.mxu0 0.0
    %1116 = vmatpush1.msra.mxu0 %v1110
    %1117 = vmatprep.subr.mxu0 0.0
    %1118 = vmatpush1.msra.mxu0 0.0
    %1119 = vmatprep.subr.mxu0 0.0
    %1120 = vmatpush1.msra.mxu0 0.0
    %1121 = vmatprep.subr.mxu0 0.0
    %1122 = vmatpush1.msra.mxu0 0.0
    %1123 = vmatprep.subr.mxu0 0.0
    %1124 = vmatpush1.msra.mxu0 0.0
    %1125 = vmatprep.subr.mxu0 0.0
    %1126 = vmatpush1.msra.mxu0 0.0
    %1127 = vmatprep.subr.mxu0 0.0
    %1128 = vmatpush1.msra.mxu0 0.0
    %1129 = vmatprep.subr.mxu0 0.0
    %1130 = vmatpush1.msra.mxu0 0.0
    %1131 = vmatprep.subr.mxu0 0.0
    %1132 = vmatpush1.msra.mxu0 0.0
    %1133 = vmatprep.subr.mxu0 0.0
    %1134 = vmatpush1.msra.mxu0 0.0
    %1135 = vmatprep.subr.mxu0 0.0
    %1136 = vmatpush1.msra.mxu0 0.0
    %1137 = vmatprep.subr.mxu0 0.0
    %1138 = vmatpush1.msra.mxu0 0.0
    %1139 = vmatprep.subr.mxu0 0.0
    %1140 = vmatpush1.msra.mxu0 0.0
    %1141 = vmatprep.subr.mxu0 0.0
    %1142 = vmatpush1.msra.mxu0 0.0
    %1143 = vmatprep.subr.mxu0 0.0
    %1144 = vmatpush1.msra.mxu0 0.0
    %1145 = vmatprep.subr.mxu0 0.0
    %1146 = vmatpush1.msra.mxu0 0.0
    %1147 = vmatprep.subr.mxu0 0.0
    %1148 = vmatpush1.msra.mxu0 0.0
    %1149 = vmatprep.subr.mxu0 0.0
    %1150 = vmatpush1.msra.mxu0 0.0
    %1151 = vmatprep.subr.mxu0 0.0
    %1152 = vmatpush1.msra.mxu0 0.0
    %1153 = vmatprep.subr.mxu0 0.0
    %1154 = vmatpush1.msra.mxu0 0.0
    %1155 = vmatprep.subr.mxu0 0.0
    %1156 = vmatpush1.msra.mxu0 0.0
    %1157 = vmatprep.subr.mxu0 0.0
    %1158 = vmatpush1.msra.mxu0 0.0
    %1159 = vmatprep.subr.mxu0 0.0
    %1160 = vmatpush1.msra.mxu0 0.0
    %1161 = vmatprep.subr.mxu0 0.0
    %1162 = vmatpush1.msra.mxu0 0.0
    %1163 = vmatprep.subr.mxu0 0.0
    %1164 = vmatpush1.msra.mxu0 0.0
    %1165 = vmatprep.subr.mxu0 0.0
    %1166 = vmatpush1.msra.mxu0 0.0
    %1167 = vmatprep.subr.mxu0 0.0
    %1168 = vmatpush1.msra.mxu0 0.0
    %1169 = vmatprep.subr.mxu0 0.0
    %1170 = vmatpush1.msra.mxu0 0.0
    %1171 = vmatprep.subr.mxu0 0.0
    %1172 = vmatpush1.msra.mxu0 0.0
    %1173 = vmatprep.subr.mxu0 0.0
    %1174 = vmatpush1.msra.mxu0 0.0
    %1175 = vmatprep.subr.mxu0 0.0
    %1176 = vmatpush1.msra.mxu0 0.0
    %1177 = vmatprep.subr.mxu0 0.0
    %1178 = vmatpush1.msra.mxu0 0.0
    %1179 = vmatprep.mubr.f32.mxu0 0.0
    %1180 = vmatmul.mubr.f32.gmra.mrb[0].mxu0 %v1113
    %v1181 = vpop.f32.mrb[0].mxu0
    %v1182 = vadd.f32 0.0, %v1181
    %v1183 = vpop.f32.mrb[0].mxu0
    %1184 = vdwg.mxu0
    %1185 = vrot.lane.b32.xlu0 %v140, 104
    %v1186 = vpop.permute.xlu0 %1185
    %1187 = vrot.lane.b32.xlu0 %v140, 72
    %v1188 = vpop.permute.xlu0 %1187
    %v1189 = vsel %vm151, %v1186, 0
    %v1191 = vsel %vm151, %v1188, 0
    %1193 = vmatprep.subr.mxu0 0.0
    %1194 = vmatpush1.xpose.msra.mxu0 %v1191
    %1195 = vmatprep.subr.mxu0 0.0
    %1196 = vmatpush1.xpose.msra.mxu0 0.0
    %1197 = vmatprep.subr.mxu0 0.0
    %1198 = vmatpush1.xpose.msra.mxu0 0.0
    %1199 = vmatprep.subr.mxu0 0.0
    %1200 = vmatpush1.xpose.msra.mxu0 0.0
    %1201 = vmatprep.subr.mxu0 0.0
    %1202 = vmatpush1.xpose.msra.mxu0 0.0
    %1203 = vmatprep.subr.mxu0 0.0
    %1204 = vmatpush1.xpose.msra.mxu0 0.0
    %1205 = vmatprep.subr.mxu0 0.0
    %1206 = vmatpush1.xpose.msra.mxu0 0.0
    %1207 = vmatprep.subr.mxu0 0.0
    %1208 = vmatpush1.xpose.msra.mxu0 0.0
    %1209 = vmatprep.subr.mxu0 0.0
    %1210 = vmatpush1.xpose.msra.mxu0 0.0
    %1211 = vmatprep.subr.mxu0 0.0
    %1212 = vmatpush1.xpose.msra.mxu0 0.0
    %1213 = vmatprep.subr.mxu0 0.0
    %1214 = vmatpush1.xpose.msra.mxu0 0.0
    %1215 = vmatprep.subr.mxu0 0.0
    %1216 = vmatpush1.xpose.msra.mxu0 0.0
    %1217 = vmatprep.subr.mxu0 0.0
    %1218 = vmatpush1.xpose.msra.mxu0 0.0
    %1219 = vmatprep.subr.mxu0 0.0
    %1220 = vmatpush1.xpose.msra.mxu0 0.0
    %1221 = vmatprep.subr.mxu0 0.0
    %1222 = vmatpush1.xpose.msra.mxu0 0.0
    %1223 = vmatprep.subr.mxu0 0.0
    %1224 = vmatpush1.xpose.msra.mxu0 0.0
    %1225 = vmatprep.subr.mxu0 0.0
    %1226 = vmatpush1.xpose.msra.mxu0 0.0
    %1227 = vmatprep.subr.mxu0 0.0
    %1228 = vmatpush1.xpose.msra.mxu0 0.0
    %1229 = vmatprep.subr.mxu0 0.0
    %1230 = vmatpush1.xpose.msra.mxu0 0.0
    %1231 = vmatprep.subr.mxu0 0.0
    %1232 = vmatpush1.xpose.msra.mxu0 0.0
    %1233 = vmatprep.subr.mxu0 0.0
    %1234 = vmatpush1.xpose.msra.mxu0 0.0
    %1235 = vmatprep.subr.mxu0 0.0
    %1236 = vmatpush1.xpose.msra.mxu0 0.0
    %1237 = vmatprep.subr.mxu0 0.0
    %1238 = vmatpush1.xpose.msra.mxu0 0.0
    %1239 = vmatprep.subr.mxu0 0.0
    %1240 = vmatpush1.xpose.msra.mxu0 0.0
    %1241 = vmatprep.subr.mxu0 0.0
    %1242 = vmatpush1.xpose.msra.mxu0 0.0
    %1243 = vmatprep.subr.mxu0 0.0
    %1244 = vmatpush1.xpose.msra.mxu0 0.0
    %1245 = vmatprep.subr.mxu0 0.0
    %1246 = vmatpush1.xpose.msra.mxu0 0.0
    %1247 = vmatprep.subr.mxu0 0.0
    %1248 = vmatpush1.xpose.msra.mxu0 0.0
    %1249 = vmatprep.subr.mxu0 0.0
    %1250 = vmatpush1.xpose.msra.mxu0 0.0
    %1251 = vmatprep.subr.mxu0 0.0
    %1252 = vmatpush1.xpose.msra.mxu0 0.0
    %1253 = vmatprep.subr.mxu0 0.0
    %1254 = vmatpush1.xpose.msra.mxu0 0.0
    %1255 = vmatprep.subr.mxu0 0.0
    %1256 = vmatpush1.xpose.msra.mxu0 0.0
    %1257 = vmatprep.mubr.f32.mxu0 0.0
    %1258 = vmatmul.mubr.f32.gmra.mrb[0].mxu0 %v1189
    %v1259 = vpop.f32.mrb[0].mxu0
    %v1260 = vadd.f32 0.0, %v1259
    %v1261 = vpop.f32.mrb[0].mxu0
    %1262 = vdwg.mxu0
    %1263 = vrot.lane.b32.xlu0 %v145, 104
    %v1264 = vpop.permute.xlu0 %1263
    %1265 = vrot.lane.b32.xlu0 %v145, 72
    %v1266 = vpop.permute.xlu0 %1265
    %v1267 = vsel %vm151, %v1264, 0
    %v1269 = vsel %vm151, %v1266, 0
    %1271 = vmatprep.subr.mxu0 0.0
    %1272 = vmatpush1.xpose.msra.mxu0 %v1269
    %1273 = vmatprep.subr.mxu0 0.0
    %1274 = vmatpush1.xpose.msra.mxu0 0.0
    %1275 = vmatprep.subr.mxu0 0.0
    %1276 = vmatpush1.xpose.msra.mxu0 0.0
    %1277 = vmatprep.subr.mxu0 0.0
    %1278 = vmatpush1.xpose.msra.mxu0 0.0
    %1279 = vmatprep.subr.mxu0 0.0
    %1280 = vmatpush1.xpose.msra.mxu0 0.0
    %1281 = vmatprep.subr.mxu0 0.0
    %1282 = vmatpush1.xpose.msra.mxu0 0.0
    %1283 = vmatprep.subr.mxu0 0.0
    %1284 = vmatpush1.xpose.msra.mxu0 0.0
    %1285 = vmatprep.subr.mxu0 0.0
    %1286 = vmatpush1.xpose.msra.mxu0 0.0
    %1287 = vmatprep.subr.mxu0 0.0
    %1288 = vmatpush1.xpose.msra.mxu0 0.0
    %1289 = vmatprep.subr.mxu0 0.0
    %1290 = vmatpush1.xpose.msra.mxu0 0.0
    %1291 = vmatprep.subr.mxu0 0.0
    %1292 = vmatpush1.xpose.msra.mxu0 0.0
    %1293 = vmatprep.subr.mxu0 0.0
    %1294 = vmatpush1.xpose.msra.mxu0 0.0
    %1295 = vmatprep.subr.mxu0 0.0
    %1296 = vmatpush1.xpose.msra.mxu0 0.0
    %1297 = vmatprep.subr.mxu0 0.0
    %1298 = vmatpush1.xpose.msra.mxu0 0.0
    %1299 = vmatprep.subr.mxu0 0.0
    %1300 = vmatpush1.xpose.msra.mxu0 0.0
    %1301 = vmatprep.subr.mxu0 0.0
    %1302 = vmatpush1.xpose.msra.mxu0 0.0
    %1303 = vmatprep.subr.mxu0 0.0
    %1304 = vmatpush1.xpose.msra.mxu0 0.0
    %1305 = vmatprep.subr.mxu0 0.0
    %1306 = vmatpush1.xpose.msra.mxu0 0.0
    %1307 = vmatprep.subr.mxu0 0.0
    %1308 = vmatpush1.xpose.msra.mxu0 0.0
    %1309 = vmatprep.subr.mxu0 0.0
    %1310 = vmatpush1.xpose.msra.mxu0 0.0
    %1311 = vmatprep.subr.mxu0 0.0
    %1312 = vmatpush1.xpose.msra.mxu0 0.0
    %1313 = vmatprep.subr.mxu0 0.0
    %1314 = vmatpush1.xpose.msra.mxu0 0.0
    %1315 = vmatprep.subr.mxu0 0.0
    %1316 = vmatpush1.xpose.msra.mxu0 0.0
    %1317 = vmatprep.subr.mxu0 0.0
    %1318 = vmatpush1.xpose.msra.mxu0 0.0
    %1319 = vmatprep.subr.mxu0 0.0
    %1320 = vmatpush1.xpose.msra.mxu0 0.0
    %1321 = vmatprep.subr.mxu0 0.0
    %1322 = vmatpush1.xpose.msra.mxu0 0.0
    %1323 = vmatprep.subr.mxu0 0.0
    %1324 = vmatpush1.xpose.msra.mxu0 0.0
    %1325 = vmatprep.subr.mxu0 0.0
    %1326 = vmatpush1.xpose.msra.mxu0 0.0
    %1327 = vmatprep.subr.mxu0 0.0
    %1328 = vmatpush1.xpose.msra.mxu0 0.0
    %1329 = vmatprep.subr.mxu0 0.0
    %1330 = vmatpush1.xpose.msra.mxu0 0.0
    %1331 = vmatprep.subr.mxu0 0.0
    %1332 = vmatpush1.xpose.msra.mxu0 0.0
    %1333 = vmatprep.subr.mxu0 0.0
    %1334 = vmatpush1.xpose.msra.mxu0 0.0
    %1335 = vmatprep.mubr.f32.mxu0 0.0
    %1336 = vmatmul.mubr.f32.gmra.mrb[0].mxu0 %v1267
    %v1337 = vpop.f32.mrb[0].mxu0
    %v1338 = vadd.f32 0.0, %v1337
    %v1339 = vpop.f32.mrb[0].mxu0
    %1340 = vdwg.mxu0
    %v1341 = vsel %vm151, %v1260, -inf
    %v1342 = vrot.slane %v1341, 4
    %v1343 = vmax.f32 %v1341, %v1342
    %v1344 = vrot.slane %v1343, 2
    %v1345 = vmax.f32 %v1343, %v1344
    %v1346 = vrot.slane %v1345, 1
    %v1347 = vmax.f32 %v1345, %v1346
    %v1348 = vsel %vm151, %v1338, -inf
    %v1349 = vrot.slane %v1348, 4
    %v1350 = vmax.f32 %v1348, %v1349
    %v1351 = vrot.slane %v1350, 2
    %v1352 = vmax.f32 %v1350, %v1351
    %v1353 = vrot.slane %v1352, 1
    %v1354 = vmax.f32 %v1352, %v1353
    %v1355 = vsub.f32 %v1260, %v1347
    %v1356 = vsub.f32 %v1338, %v1354
    %v1357 = vmul.f32 %v1355, 1.442695
    %v1358 = vpow.pop %v1357
    %v1359 = vmul.f32 %v1356, 1.442695
    %v1360 = vpow.pop %v1359
    %v1361 = vsel %vm151, %v1358, 0.0
    %v1362 = vrot.slane %v1361, 4
    %v1363 = vadd.f32 %v1361, %v1362
    %v1364 = vrot.slane %v1363, 2
    %v1365 = vadd.f32 %v1363, %v1364
    %v1366 = vrot.slane %v1365, 1
    %v1367 = vadd.f32 %v1365, %v1366
    %v1368 = vsel %vm151, %v1360, 0.0
    %v1369 = vrot.slane %v1368, 4
    %v1370 = vadd.f32 %v1368, %v1369
    %v1371 = vrot.slane %v1370, 2
    %v1372 = vadd.f32 %v1370, %v1371
    %v1373 = vrot.slane %v1372, 1
    %v1374 = vadd.f32 %v1372, %v1373
    %v1375 = vrcp.pop %v1367
    %v1376 = vmul.f32 %v1358, %v1375
    %v1377 = vrcp.pop %v1374
    %v1378 = vmul.f32 %v1360, %v1377
    %1379 = vrot.lane.b32.xlu0 %v140, 40
    %v1380 = vpop.permute.xlu0 %1379
    %v1383 = vsel %vm151, %v1376, 0
    %1385 = vmatprep.subr.mxu0 0.0
    %1386 = vmatpush1.msra.mxu0 %v1380
    %1387 = vmatprep.subr.mxu0 0.0
    %1388 = vmatpush1.msra.mxu0 0.0
    %1389 = vmatprep.subr.mxu0 0.0
    %1390 = vmatpush1.msra.mxu0 0.0
    %1391 = vmatprep.subr.mxu0 0.0
    %1392 = vmatpush1.msra.mxu0 0.0
    %1393 = vmatprep.subr.mxu0 0.0
    %1394 = vmatpush1.msra.mxu0 0.0
    %1395 = vmatprep.subr.mxu0 0.0
    %1396 = vmatpush1.msra.mxu0 0.0
    %1397 = vmatprep.subr.mxu0 0.0
    %1398 = vmatpush1.msra.mxu0 0.0
    %1399 = vmatprep.subr.mxu0 0.0
    %1400 = vmatpush1.msra.mxu0 0.0
    %1401 = vmatprep.subr.mxu0 0.0
    %1402 = vmatpush1.msra.mxu0 0.0
    %1403 = vmatprep.subr.mxu0 0.0
    %1404 = vmatpush1.msra.mxu0 0.0
    %1405 = vmatprep.subr.mxu0 0.0
    %1406 = vmatpush1.msra.mxu0 0.0
    %1407 = vmatprep.subr.mxu0 0.0
    %1408 = vmatpush1.msra.mxu0 0.0
    %1409 = vmatprep.subr.mxu0 0.0
    %1410 = vmatpush1.msra.mxu0 0.0
    %1411 = vmatprep.subr.mxu0 0.0
    %1412 = vmatpush1.msra.mxu0 0.0
    %1413 = vmatprep.subr.mxu0 0.0
    %1414 = vmatpush1.msra.mxu0 0.0
    %1415 = vmatprep.subr.mxu0 0.0
    %1416 = vmatpush1.msra.mxu0 0.0
    %1417 = vmatprep.subr.mxu0 0.0
    %1418 = vmatpush1.msra.mxu0 0.0
    %1419 = vmatprep.subr.mxu0 0.0
    %1420 = vmatpush1.msra.mxu0 0.0
    %1421 = vmatprep.subr.mxu0 0.0
    %1422 = vmatpush1.msra.mxu0 0.0
    %1423 = vmatprep.subr.mxu0 0.0
    %1424 = vmatpush1.msra.mxu0 0.0
    %1425 = vmatprep.subr.mxu0 0.0
    %1426 = vmatpush1.msra.mxu0 0.0
    %1427 = vmatprep.subr.mxu0 0.0
    %1428 = vmatpush1.msra.mxu0 0.0
    %1429 = vmatprep.subr.mxu0 0.0
    %1430 = vmatpush1.msra.mxu0 0.0
    %1431 = vmatprep.subr.mxu0 0.0
    %1432 = vmatpush1.msra.mxu0 0.0
    %1433 = vmatprep.subr.mxu0 0.0
    %1434 = vmatpush1.msra.mxu0 0.0
    %1435 = vmatprep.subr.mxu0 0.0
    %1436 = vmatpush1.msra.mxu0 0.0
    %1437 = vmatprep.subr.mxu0 0.0
    %1438 = vmatpush1.msra.mxu0 0.0
    %1439 = vmatprep.subr.mxu0 0.0
    %1440 = vmatpush1.msra.mxu0 0.0
    %1441 = vmatprep.subr.mxu0 0.0
    %1442 = vmatpush1.msra.mxu0 0.0
    %1443 = vmatprep.subr.mxu0 0.0
    %1444 = vmatpush1.msra.mxu0 0.0
    %1445 = vmatprep.subr.mxu0 0.0
    %1446 = vmatpush1.msra.mxu0 0.0
    %1447 = vmatprep.subr.mxu0 0.0
    %1448 = vmatpush1.msra.mxu0 0.0
    %1449 = vmatprep.mubr.f32.mxu0 0.0
    %1450 = vmatmul.mubr.f32.gmra.mrb[0].mxu0 %v1383
    %v1451 = vpop.f32.mrb[0].mxu0
    %v1452 = vadd.f32 0.0, %v1451
    %v1453 = vpop.f32.mrb[0].mxu0
    %1454 = vdwg.mxu0
    %1455 = vrot.lane.b32.xlu0 %v145, 40
    %v1456 = vpop.permute.xlu0 %1455
    %v1459 = vsel %vm151, %v1378, 0
    %1461 = vmatprep.subr.mxu0 0.0
    %1462 = vmatpush1.msra.mxu0 %v1456
    %1463 = vmatprep.subr.mxu0 0.0
    %1464 = vmatpush1.msra.mxu0 0.0
    %1465 = vmatprep.subr.mxu0 0.0
    %1466 = vmatpush1.msra.mxu0 0.0
    %1467 = vmatprep.subr.mxu0 0.0
    %1468 = vmatpush1.msra.mxu0 0.0
    %1469 = vmatprep.subr.mxu0 0.0
    %1470 = vmatpush1.msra.mxu0 0.0
    %1471 = vmatprep.subr.mxu0 0.0
    %1472 = vmatpush1.msra.mxu0 0.0
    %1473 = vmatprep.subr.mxu0 0.0
    %1474 = vmatpush1.msra.mxu0 0.0
    %1475 = vmatprep.subr.mxu0 0.0
    %1476 = vmatpush1.msra.mxu0 0.0
    %1477 = vmatprep.subr.mxu0 0.0
    %1478 = vmatpush1.msra.mxu0 0.0
    %1479 = vmatprep.subr.mxu0 0.0
    %1480 = vmatpush1.msra.mxu0 0.0
    %1481 = vmatprep.subr.mxu0 0.0
    %1482 = vmatpush1.msra.mxu0 0.0
    %1483 = vmatprep.subr.mxu0 0.0
    %1484 = vmatpush1.msra.mxu0 0.0
    %1485 = vmatprep.subr.mxu0 0.0
    %1486 = vmatpush1.msra.mxu0 0.0
    %1487 = vmatprep.subr.mxu0 0.0
    %1488 = vmatpush1.msra.mxu0 0.0
    %1489 = vmatprep.subr.mxu0 0.0
    %1490 = vmatpush1.msra.mxu0 0.0
    %1491 = vmatprep.subr.mxu0 0.0
    %1492 = vmatpush1.msra.mxu0 0.0
    %1493 = vmatprep.subr.mxu0 0.0
    %1494 = vmatpush1.msra.mxu0 0.0
    %1495 = vmatprep.subr.mxu0 0.0
    %1496 = vmatpush1.msra.mxu0 0.0
    %1497 = vmatprep.subr.mxu0 0.0
    %1498 = vmatpush1.msra.mxu0 0.0
    %1499 = vmatprep.subr.mxu0 0.0
    %1500 = vmatpush1.msra.mxu0 0.0
    %1501 = vmatprep.subr.mxu0 0.0
    %1502 = vmatpush1.msra.mxu0 0.0
    %1503 = vmatprep.subr.mxu0 0.0
    %1504 = vmatpush1.msra.mxu0 0.0
    %1505 = vmatprep.subr.mxu0 0.0
    %1506 = vmatpush1.msra.mxu0 0.0
    %1507 = vmatprep.subr.mxu0 0.0
    %1508 = vmatpush1.msra.mxu0 0.0
    %1509 = vmatprep.subr.mxu0 0.0
    %1510 = vmatpush1.msra.mxu0 0.0
    %1511 = vmatprep.subr.mxu0 0.0
    %1512 = vmatpush1.msra.mxu0 0.0
    %1513 = vmatprep.subr.mxu0 0.0
    %1514 = vmatpush1.msra.mxu0 0.0
    %1515 = vmatprep.subr.mxu0 0.0
    %1516 = vmatpush1.msra.mxu0 0.0
    %1517 = vmatprep.subr.mxu0 0.0
    %1518 = vmatpush1.msra.mxu0 0.0
    %1519 = vmatprep.subr.mxu0 0.0
    %1520 = vmatpush1.msra.mxu0 0.0
    %1521 = vmatprep.subr.mxu0 0.0
    %1522 = vmatpush1.msra.mxu0 0.0
    %1523 = vmatprep.subr.mxu0 0.0
    %1524 = vmatpush1.msra.mxu0 0.0
    %1525 = vmatprep.mubr.f32.mxu0 0.0
    %1526 = vmatmul.mubr.f32.gmra.mrb[0].mxu0 %v1459
    %v1527 = vpop.f32.mrb[0].mxu0
    %v1528 = vadd.f32 0.0, %v1527
    %v1529 = vpop.f32.mrb[0].mxu0
    %1530 = vdwg.mxu0
    %1533 = vrot.lane.b32.xlu0 %v760, 8
    %v1534 = vpop.permute.xlu0 %1533
    %1535 = vrot.lane.b32.xlu0 %v836, 8
    %v1536 = vpop.permute.xlu0 %1535
    %1541 = vrot.lane.b32.xlu0 %v1106, 16
    %v1542 = vpop.permute.xlu0 %1541
    %1543 = vrot.lane.b32.xlu0 %v1182, 16
    %v1544 = vpop.permute.xlu0 %1543
    %1549 = vrot.lane.b32.xlu0 %v1452, 24
    %v1550 = vpop.permute.xlu0 %1549
    %1551 = vrot.lane.b32.xlu0 %v1528, 24
    %v1552 = vpop.permute.xlu0 %1551
    %v1555 = vsel %vm151, %v414, %v1534
    %v1556 = vsel %vm151, %v490, %v1536
    %vm1557 = vcmask 130048
    %v1558 = vsel %vm1557, %v1555, %v1542
    %v1559 = vsel %vm1557, %v1556, %v1544
    %vm1560 = vcmask 195584
    %v1561 = vsel %vm1560, %v1558, %v1550
    %v1562 = vsel %vm1560, %v1559, %v1552
    %v1564 = vsel %vm66, %v1561, 0
    %v1567 = vsel %vm66, %v1562, 0
    %1569 = vmatprep.subr.mxu0 0.0
    %1570 = vmatpush1.msra.mxu0 %v62
    %1571 = vmatprep.subr.mxu0 0.0
    %1572 = vmatpush1.msra.mxu0 %v63
    %1573 = vmatprep.subr.mxu0 0.0
    %1574 = vmatpush1.msra.mxu0 %v64
    %1575 = vmatprep.subr.mxu0 0.0
    %1576 = vmatpush1.msra.mxu0 %v65
    %1577 = vmatprep.subr.mxu0 0.0
    %1578 = vmatpush1.msra.mxu0 0.0
    %1579 = vmatprep.subr.mxu0 0.0
    %1580 = vmatpush1.msra.mxu0 0.0
    %1581 = vmatprep.subr.mxu0 0.0
    %1582 = vmatpush1.msra.mxu0 0.0
    %1583 = vmatprep.subr.mxu0 0.0
    %1584 = vmatpush1.msra.mxu0 0.0
    %1585 = vmatprep.subr.mxu0 0.0
    %1586 = vmatpush1.msra.mxu0 0.0
    %1587 = vmatprep.subr.mxu0 0.0
    %1588 = vmatpush1.msra.mxu0 0.0
    %1589 = vmatprep.subr.mxu0 0.0
    %1590 = vmatpush1.msra.mxu0 0.0
    %1591 = vmatprep.subr.mxu0 0.0
    %1592 = vmatpush1.msra.mxu0 0.0
    %1593 = vmatprep.subr.mxu0 0.0
    %1594 = vmatpush1.msra.mxu0 0.0
    %1595 = vmatprep.subr.mxu0 0.0
    %1596 = vmatpush1.msra.mxu0 0.0
    %1597 = vmatprep.subr.mxu0 0.0
    %1598 = vmatpush1.msra.mxu0 0.0
    %1599 = vmatprep.subr.mxu0 0.0
    %1600 = vmatpush1.msra.mxu0 0.0
    %1601 = vmatprep.subr.mxu0 0.0
    %1602 = vmatpush1.msra.mxu0 0.0
    %1603 = vmatprep.subr.mxu0 0.0
    %1604 = vmatpush1.msra.mxu0 0.0
    %1605 = vmatprep.subr.mxu0 0.0
    %1606 = vmatpush1.msra.mxu0 0.0
    %1607 = vmatprep.subr.mxu0 0.0
    %1608 = vmatpush1.msra.mxu0 0.0
    %1609 = vmatprep.subr.mxu0 0.0
    %1610 = vmatpush1.msra.mxu0 0.0
    %1611 = vmatprep.subr.mxu0 0.0
    %1612 = vmatpush1.msra.mxu0 0.0
    %1613 = vmatprep.subr.mxu0 0.0
    %1614 = vmatpush1.msra.mxu0 0.0
    %1615 = vmatprep.subr.mxu0 0.0
    %1616 = vmatpush1.msra.mxu0 0.0
    %1617 = vmatprep.subr.mxu0 0.0
    %1618 = vmatpush1.msra.mxu0 0.0
    %1619 = vmatprep.subr.mxu0 0.0
    %1620 = vmatpush1.msra.mxu0 0.0
    %1621 = vmatprep.subr.mxu0 0.0
    %1622 = vmatpush1.msra.mxu0 0.0
    %1623 = vmatprep.subr.mxu0 0.0
    %1624 = vmatpush1.msra.mxu0 0.0
    %1625 = vmatprep.subr.mxu0 0.0
    %1626 = vmatpush1.msra.mxu0 0.0
    %1627 = vmatprep.subr.mxu0 0.0
    %1628 = vmatpush1.msra.mxu0 0.0
    %1629 = vmatprep.subr.mxu0 0.0
    %1630 = vmatpush1.msra.mxu0 0.0
    %1631 = vmatprep.subr.mxu0 0.0
    %1632 = vmatpush1.msra.mxu0 0.0
    %1633 = vmatprep.mubr.f32.mxu0 0.0
    %1634 = vmatmul.mubr.f32.gmra.mrb[0].mxu0 %v1564
    %v1635 = vpop.f32.mrb[0].mxu0
    %v1636 = vadd.f32 0.0, %v1635
    %v1637 = vpop.f32.mrb[0].mxu0
    %1638 = vmatprep.mubr.f32.mxu0 0.0
    %1639 = vmatmul.mubr.f32.gmra.mrb[0].mxu0 %v1567
    %v1640 = vpop.f32.mrb[0].mxu0
    %v1641 = vadd.f32 0.0, %v1640
    %v1642 = vpop.f32.mrb[0].mxu0
    %1643 = vdwg.mxu0
    %1644 = vst.msk [vmem:[#allocation8] sm:$0xff] %vm66, %v1636
    %1645 = vst.msk [vmem:[#allocation8 + $0x8] sm:$0xff] %vm66, %v1641
    // Predicated region
    $region26: #{tpu_custom_call.1} parent=1 // pred_check
      _
    $region27: #{tpu_custom_call.1} parent=1 // pred_check_branch
      %1647 = sbr.rel (0) target = $region29
    $region28: #{tpu_custom_call.1} parent=1 // pred_region
      %s1649 = ssub.s32 256, 256
      %1650 = vsyncadd [#allocation4], %s1649
      %s1651 = sshll.u32 [#allocation8], 4
      %s1652 = int_to_ptr.vmem [resolvable:$true] %s1651
      %1657 = dma.vmem_to_hbm [thread:$0]  %s1652, 256, %s3, [#allocation4], 128, 128, 8
    $region29: #{tpu_custom_call.1} parent=1 // pred_fallthru
      _
    // Predicated region
    $region30: #{tpu_custom_call.1} parent=1 // pred_check
      _
    $region31: #{tpu_custom_call.1} parent=1 // pred_check_branch
      %1659 = sbr.rel (0) target = $region33
    $region32: #{tpu_custom_call.1} parent=1 // pred_region
      %1660 = dma.done [#allocation4], 256
    $region33: #{tpu_custom_call.1} parent=1 // pred_fallthru
      _
    %1661 = vsyncpa [#allocation3], 1
    %1662 = vsyncpa [#allocation6], 1
    %1663 = vsyncpa [#allocation4], 1

</llo_original>
